<compile_context>
chip_gen: v7x
topology: tpu7x:2x2x1
jax: 0.10.0
libtpu: 0.0.40
codegen_flags: <defaults>
</compile_context>

<pallas_src>
import functools

import jax
import jax.numpy as jnp
from jax import lax
from jax.experimental import pallas as pl


def _layernorm(h, g, b, eps=1e-5):
    mu = jnp.mean(h, axis=-1, keepdims=True)
    hc = h - mu
    var = jnp.mean(hc * hc, axis=-1, keepdims=True)
    return hc * lax.rsqrt(var + eps) * g + b


def _shift_cols(m, off):
    """shifted[:, w] = m[:, w + off], zero padded outside. `off` is static."""
    rows, width = m.shape
    if off == 0:
        return m
    if off >= width or -off >= width:
        return jnp.zeros_like(m)
    zeros = jnp.zeros((rows, abs(off)), m.dtype)
    if off > 0:
        return jnp.concatenate([m[:, off:], zeros], axis=1)
    return jnp.concatenate([zeros, m[:, :width + off]], axis=1)


def _timelinear_kernel(
    xn_ref,     # (L, B*C)    normalized series, column layout
    stats_ref,  # (2, B*C)    row 0 = means, row 1 = stdev
    xm_ref,     # (B*L, T)    time marks, row layout
    fft_ref,    # (B*P, 2C)   [|rfft|, angle] features, row layout
    proj_ref,   # (2P, L+1)   [hist_w | hist_b ; time_w | time_b]
    te1_ref,    # (T+3, d1)   [te1_w ; te1_b ; ln1_g ; ln1_b]
    te2_ref,    # (d1+3, d2)  [te2_w ; te2_b ; ln2_g ; ln2_b]
    conv_ref,   # (L, K*L+1)  [conv_w_flat | conv_b]
    head_ref,   # (d2+c4+2, c_out)  [te3_w ; freq_w ; te3_b ; freq_b]
    fftw_ref,   # (2C+1, c4)  [fftl_w ; fftl_b]
    out_ref,    # (P, B*c_out)
    *, beta):
    f32 = jnp.float32
    L, _ = xn_ref.shape
    BL, T = xm_ref.shape
    B = BL // L
    BP, twoC = fft_ref.shape
    P = BP // B
    d1 = te1_ref.shape[1]
    d2 = te2_ref.shape[1]
    c4 = fftw_ref.shape[1]
    K = (conv_ref.shape[1] - 1) // L
    pad = (K - 1) // 2

    means = stats_ref[0:1, :].astype(f32)               # (1, B*C)
    stdev = stats_ref[1:2, :].astype(f32)               # (1, B*C)
    xn = xn_ref[...].astype(f32)                        # (L, B*C)

    # ---- time_enc: Linear -> LN -> ReLU -> Linear -> LN -> ReLU on B*L rows ----
    xm = xm_ref[...].astype(f32)
    h = jnp.dot(xm, te1_ref[0:T, :], preferred_element_type=f32) + te1_ref[T:T + 1, :]
    h = _layernorm(h, te1_ref[T + 1:T + 2, :], te1_ref[T + 2:T + 3, :])
    h = jnp.maximum(h, 0.0)
    h = jnp.dot(h, te2_ref[0:d1, :], preferred_element_type=f32) + te2_ref[d1:d1 + 1, :]
    h = _layernorm(h, te2_ref[d1 + 1:d1 + 2, :], te2_ref[d1 + 2:d1 + 3, :])
    h = jnp.maximum(h, 0.0)                              # (B*L, d2)

    # ---- Conv1d(in=L, out=L, K, padding='same') over width d2: stack the K
    #      shifted copies (slice/concat only) and fuse all taps + the batch
    #      into a single (L, K*L) x (K*L, B*d2) matmul. ----
    blocks = []
    for k in range(K):                                   # static unroll, K small
        off = k - pad
        blocks.append(jnp.concatenate(
            [_shift_cols(h[b * L:(b + 1) * L, :], off) for b in range(B)], axis=1))
    stacked = jnp.concatenate(blocks, axis=0)            # (K*L, B*d2)
    conv = jnp.dot(conv_ref[:, :K * L], stacked,
                   preferred_element_type=f32) + conv_ref[:, K * L:]   # (L, B*d2)

    # ---- final Linear(d2 -> c_out) of time_enc, per batch lane-group ----
    te3_w = head_ref[0:d2, :]
    te3_b = head_ref[d2 + c4:d2 + c4 + 1, :]
    time_embed = jnp.concatenate(
        [jnp.dot(conv[:, b * d2:(b + 1) * d2], te3_w,
                 preferred_element_type=f32) + te3_b
         for b in range(B)], axis=1)                     # (L, B*c_out)

    # ---- time-axis projections: Linear(L -> P) acting on the transposed series ----
    hist_w = proj_ref[0:P, 0:L]
    hist_b = proj_ref[0:P, L:L + 1]
    time_w = proj_ref[P:2 * P, 0:L]
    time_b = proj_ref[P:2 * P, L:L + 1]
    time_out = jnp.dot(time_w, time_embed, preferred_element_type=f32) + time_b  # (P, B*c_out)
    pred = jnp.dot(hist_w, xn, preferred_element_type=f32) + hist_b              # (P, B*C)

    pred = beta * pred + (1.0 - beta) * time_out
    pred = pred * stdev + means

    # ---- FFT branch dense layers (features precomputed in the wrapper) ----
    g = jnp.dot(fft_ref[...].astype(f32), fftw_ref[0:twoC, :],
                preferred_element_type=f32) + fftw_ref[twoC:twoC + 1, :]
    g = jnp.maximum(g, 0.0)
    g = jnp.dot(g, head_ref[d2:d2 + c4, :],
                preferred_element_type=f32) + head_ref[d2 + c4 + 1:d2 + c4 + 2, :]  # (B*P, c_out)
    g = jnp.concatenate([g[b * P:(b + 1) * P, :] for b in range(B)], axis=1)        # (P, B*c_out)

    # Same (double) re-scaling as the PyTorch module.
    combined = beta * (pred + g) + (1.0 - beta) * time_out
    out_ref[...] = (combined * stdev + means).astype(out_ref.dtype)


def _pack_params(params):
    """Pack the ~20 small parameter tensors into 6 arrays (static row/col slots)."""
    f32 = jnp.float32
    proj = jnp.concatenate(
        [jnp.concatenate([params["hist_w"], params["hist_b"]], axis=1),
         jnp.concatenate([params["time_w"], params["time_b"]], axis=1)],
        axis=0).astype(f32)                                            # (2P, L+1)
    te1 = jnp.concatenate([params["te1_w"], params["te1_b"],
                           params["ln1_g"], params["ln1_b"]], axis=0).astype(f32)
    te2 = jnp.concatenate([params["te2_w"], params["te2_b"],
                           params["ln2_g"], params["ln2_b"]], axis=0).astype(f32)
    conv_w = params["conv_w"]                                          # (K, L, L): [k, o, i]
    K, L, _ = conv_w.shape
    conv_flat = jnp.transpose(conv_w, (1, 0, 2)).reshape(L, K * L)     # [o, k*L + i]
    conv = jnp.concatenate([conv_flat, params["conv_b"]], axis=1).astype(f32)  # (L, K*L+1)
    head = jnp.concatenate([params["te3_w"], params["freq_w"],
                            params["te3_b"], params["freq_b"]], axis=0).astype(f32)
    fftp = jnp.concatenate([params["fftl_w"], params["fftl_b"]], axis=0).astype(f32)
    return proj, te1, te2, conv, head, fftp


def timelinear_forward(x, x_mark_enc, params, *, pred_len, beta):
    f32 = jnp.float32
    B, L, C = x.shape
    T = x_mark_enc.shape[-1]
    c_out = params["te3_w"].shape[1]

    x32 = x.astype(f32)
    # Normalization stats (torch.var is unbiased) + rFFT magnitude/phase features.
    # TODO(synk): torch.fft.rfft / torch.angle have no Pallas TPU equivalent;
    # they run here as plain XLA ops, everything else runs inside the kernel.
    means = jnp.mean(x32, axis=1, keepdims=True)                               # (B,1,C)
    stdev = jnp.sqrt(jnp.var(x32, axis=1, keepdims=True, ddof=1) + 1e-5)       # (B,1,C)
    xn = (x32 - means) / stdev                                                 # (B,L,C)
    fft = jnp.fft.rfft(xn, axis=1)                                             # (B,P,C)
    fft_feats = jnp.concatenate([jnp.abs(fft), jnp.angle(fft)], axis=-1)       # (B,P,2C)
    P = fft_feats.shape[1]

    # Layout plumbing (wrapper side, free): column layout for the time-axis
    # projections, row layout for the per-timestep MLPs.
    xn_c = jnp.transpose(xn, (1, 0, 2)).reshape(L, B * C)                      # (L, B*C)
    stats = jnp.concatenate([means.reshape(1, B * C),
                             stdev.reshape(1, B * C)], axis=0)                 # (2, B*C)
    xm_r = x_mark_enc.astype(f32).reshape(B * L, T)                            # (B*L, T)
    fft_r = fft_feats.reshape(B * P, 2 * C)                                    # (B*P, 2C)

    packed = _pack_params(params)

    out_cols = pl.pallas_call(
        functools.partial(_timelinear_kernel, beta=beta),
        out_shape=jax.ShapeDtypeStruct((P, B * c_out), f32),
    )(xn_c, stats, xm_r, fft_r, *packed)

    out = jnp.transpose(out_cols.reshape(P, B, c_out), (1, 0, 2)).astype(x.dtype)
    return out[:, -pred_len:, :]


def init_params(key, *, seq_len, pred_len, c_out, time_dim, rda, rdb, ksize):
    d1 = c_out // rda
    d2 = c_out // rdb
    c4 = c_out // 4
    ks = jax.random.split(key, 16)

    def lin(k, fan_in, shape):
        return jax.random.normal(k, shape, jnp.float32) / jnp.sqrt(float(fan_in))

    return {
        # histroy_proj / time_proj: torch weight layout (out=pred_len, in=seq_len)
        "hist_w": lin(ks[0], seq_len, (pred_len, seq_len)),
        "hist_b": lin(ks[1], seq_len, (pred_len, 1)),
        "time_w": lin(ks[2], seq_len, (pred_len, seq_len)),
        "time_b": lin(ks[3], seq_len, (pred_len, 1)),
        # fft_layer / freq_proj: stored transposed as (in, out)
        "fftl_w": lin(ks[4], seq_len, (seq_len, c4)),
        "fftl_b": lin(ks[5], seq_len, (1, c4)),
        "freq_w": lin(ks[6], c4, (c4, c_out)),
        "freq_b": lin(ks[7], c4, (1, c_out)),
        # time_enc
        "te1_w": lin(ks[8], time_dim, (time_dim, d1)),
        "te1_b": lin(ks[9], time_dim, (1, d1)),
        "ln1_g": jnp.ones((1, d1), jnp.float32),
        "ln1_b": jnp.zeros((1, d1), jnp.float32),
        "te2_w": lin(ks[10], d1, (d1, d2)),
        "te2_b": lin(ks[11], d1, (1, d2)),
        "ln2_g": jnp.ones((1, d2), jnp.float32),
        "ln2_b": jnp.zeros((1, d2), jnp.float32),
        # Conv1d weight (out=L, in=L, K) stored as (K, L, L); bias as (L, 1)
        "conv_w": jnp.transpose(
            lin(ks[12], seq_len * ksize, (seq_len, seq_len, ksize)), (2, 0, 1)),
        "conv_b": lin(ks[13], seq_len * ksize, (seq_len, 1)),
        "te3_w": lin(ks[14], d2, (d2, c_out)),
        "te3_b": lin(ks[15], d2, (1, c_out)),
    }


if __name__ == "__main__":
    # Shapes consistent with the module's internal constraints:
    #   fft_layer(Linear(seq_len, .)) on cat([|fft|, angle]) requires 2*enc_in == seq_len,
    #   pred + fft_feats requires pred_len == seq_len//2 + 1,
    #   pred + time_out requires enc_in == c_out.
    B = 2
    seq_len = 16
    c_out = 8                       # == enc_in (number of series channels)
    pred_len = seq_len // 2 + 1     # 9
    time_dim = 4                    # len(args.time_feature_types)
    rda, rdb, ksize = 2, 4, 3
    beta = 0.3

    key = jax.random.PRNGKey(0)
    kx, km, kd, kp = jax.random.split(key, 4)
    x = jax.random.normal(kx, (B, seq_len, c_out), jnp.float32)
    x_mark_enc = jax.random.normal(km, (B, seq_len, time_dim), jnp.float32)
    # x_dec / y_mark_dec / mask are accepted but unused by the PyTorch forward.
    x_dec = jax.random.normal(kd, (B, pred_len, c_out), jnp.float32)
    y_mark_dec = jnp.zeros((B, pred_len, time_dim), jnp.float32)

    params = init_params(kp, seq_len=seq_len, pred_len=pred_len, c_out=c_out,
                         time_dim=time_dim, rda=rda, rdb=rdb, ksize=ksize)

    fwd = jax.jit(functools.partial(timelinear_forward, pred_len=pred_len, beta=beta))
    out = fwd(x, x_mark_enc, params)
    out = jax.block_until_ready(out)
    assert out.shape == (B, pred_len, c_out)
    print("KERNEL_OK")
</pallas_src>

<mosaic_0001>
module attributes {stable_mosaic.version = 11 : i64} {
  func.func @_timelinear_kernel(%arg0: memref<16x16xf32, #tpu.memory_space<vmem>>, %arg1: memref<2x16xf32, #tpu.memory_space<vmem>>, %arg2: memref<32x4xf32, #tpu.memory_space<vmem>>, %arg3: memref<18x16xf32, #tpu.memory_space<vmem>>, %arg4: memref<18x17xf32, #tpu.memory_space<vmem>>, %arg5: memref<7x4xf32, #tpu.memory_space<vmem>>, %arg6: memref<7x2xf32, #tpu.memory_space<vmem>>, %arg7: memref<16x49xf32, #tpu.memory_space<vmem>>, %arg8: memref<6x8xf32, #tpu.memory_space<vmem>>, %arg9: memref<17x2xf32, #tpu.memory_space<vmem>>, %arg10: memref<9x16xf32, #tpu.memory_space<vmem>>) attributes {dimension_semantics = [], scalar_prefetch = 0 : i64, scratch_operands = 0 : i64, tpu.core_type = #tpu.core_type<tc>} {
    %c0 = arith.constant 0 : index
    %c0_0 = arith.constant 0 : index
    %0 = vector.load %arg1[%c0, %c0_0] : memref<2x16xf32, #tpu.memory_space<vmem>>, vector<1x16xf32>
    %c1 = arith.constant 1 : index
    %c0_1 = arith.constant 0 : index
    %1 = vector.load %arg1[%c1, %c0_1] : memref<2x16xf32, #tpu.memory_space<vmem>>, vector<1x16xf32>
    %c0_2 = arith.constant 0 : index
    %c0_3 = arith.constant 0 : index
    %2 = vector.load %arg0[%c0_2, %c0_3] : memref<16x16xf32, #tpu.memory_space<vmem>>, vector<16x16xf32>
    %c0_4 = arith.constant 0 : index
    %c0_5 = arith.constant 0 : index
    %3 = vector.load %arg2[%c0_4, %c0_5] : memref<32x4xf32, #tpu.memory_space<vmem>>, vector<32x4xf32>
    %c0_6 = arith.constant 0 : index
    %c0_7 = arith.constant 0 : index
    %4 = vector.load %arg5[%c0_6, %c0_7] : memref<7x4xf32, #tpu.memory_space<vmem>>, vector<4x4xf32>
    %cst = arith.constant dense<0.000000e+00> : vector<32x4xf32>
    %5 = tpu.matmul %3, %4, %cst {dimension_numbers = #tpu.dot_dimension_numbers<[1], [0], [0], [1], [0, 0, 1, 1], [], []>} : vector<32x4xf32>, vector<4x4xf32>, vector<32x4xf32> -> vector<32x4xf32>
    %c4 = arith.constant 4 : index
    %c0_8 = arith.constant 0 : index
    %6 = vector.load %arg5[%c4, %c0_8] : memref<7x4xf32, #tpu.memory_space<vmem>>, vector<1x4xf32>
    %7 = vector.broadcast %6 : vector<1x4xf32> to vector<32x4xf32>
    %8 = arith.addf %5, %7 : vector<32x4xf32>
    %c5 = arith.constant 5 : index
    %c0_9 = arith.constant 0 : index
    %9 = vector.load %arg5[%c5, %c0_9] : memref<7x4xf32, #tpu.memory_space<vmem>>, vector<1x4xf32>
    %c6 = arith.constant 6 : index
    %c0_10 = arith.constant 0 : index
    %10 = vector.load %arg5[%c6, %c0_10] : memref<7x4xf32, #tpu.memory_space<vmem>>, vector<1x4xf32>
    %cst_11 = arith.constant dense<0.000000e+00> : vector<32xf32>
    %11 = vector.multi_reduction <add>, %8, %cst_11 [1] : vector<32x4xf32> to vector<32xf32>
    %12 = vector.shape_cast %11 : vector<32xf32> to vector<32x1xf32>
    %cst_12 = arith.constant 4.000000e+00 : f32
    %13 = vector.broadcast %cst_12 : f32 to vector<32x1xf32>
    %14 = arith.divf %12, %13 : vector<32x1xf32>
    %15 = vector.broadcast %14 : vector<32x1xf32> to vector<32x4xf32>
    %16 = arith.subf %8, %15 : vector<32x4xf32>
    %17 = arith.mulf %16, %16 : vector<32x4xf32>
    %cst_13 = arith.constant dense<0.000000e+00> : vector<32xf32>
    %18 = vector.multi_reduction <add>, %17, %cst_13 [1] : vector<32x4xf32> to vector<32xf32>
    %19 = vector.shape_cast %18 : vector<32xf32> to vector<32x1xf32>
    %cst_14 = arith.constant 4.000000e+00 : f32
    %20 = vector.broadcast %cst_14 : f32 to vector<32x1xf32>
    %21 = arith.divf %19, %20 : vector<32x1xf32>
    %cst_15 = arith.constant 9.99999974E-6 : f32
    %22 = vector.broadcast %cst_15 : f32 to vector<32x1xf32>
    %23 = arith.addf %21, %22 : vector<32x1xf32>
    %24 = math.rsqrt %23 : vector<32x1xf32>
    %25 = vector.broadcast %24 : vector<32x1xf32> to vector<32x4xf32>
    %26 = arith.mulf %16, %25 : vector<32x4xf32>
    %27 = vector.broadcast %9 : vector<1x4xf32> to vector<32x4xf32>
    %28 = arith.mulf %26, %27 : vector<32x4xf32>
    %29 = vector.broadcast %10 : vector<1x4xf32> to vector<32x4xf32>
    %30 = arith.addf %28, %29 : vector<32x4xf32>
    %cst_16 = arith.constant 0.000000e+00 : f32
    %31 = vector.broadcast %cst_16 : f32 to vector<32x4xf32>
    %32 = arith.maximumf %30, %31 : vector<32x4xf32>
    %c0_17 = arith.constant 0 : index
    %c0_18 = arith.constant 0 : index
    %33 = vector.load %arg6[%c0_17, %c0_18] : memref<7x2xf32, #tpu.memory_space<vmem>>, vector<4x2xf32>
    %cst_19 = arith.constant dense<0.000000e+00> : vector<32x2xf32>
    %34 = tpu.matmul %32, %33, %cst_19 {dimension_numbers = #tpu.dot_dimension_numbers<[1], [0], [0], [1], [0, 0, 1, 1], [], []>} : vector<32x4xf32>, vector<4x2xf32>, vector<32x2xf32> -> vector<32x2xf32>
    %c4_20 = arith.constant 4 : index
    %c0_21 = arith.constant 0 : index
    %35 = vector.load %arg6[%c4_20, %c0_21] : memref<7x2xf32, #tpu.memory_space<vmem>>, vector<1x2xf32>
    %36 = vector.broadcast %35 : vector<1x2xf32> to vector<32x2xf32>
    %37 = arith.addf %34, %36 : vector<32x2xf32>
    %c5_22 = arith.constant 5 : index
    %c0_23 = arith.constant 0 : index
    %38 = vector.load %arg6[%c5_22, %c0_23] : memref<7x2xf32, #tpu.memory_space<vmem>>, vector<1x2xf32>
    %c6_24 = arith.constant 6 : index
    %c0_25 = arith.constant 0 : index
    %39 = vector.load %arg6[%c6_24, %c0_25] : memref<7x2xf32, #tpu.memory_space<vmem>>, vector<1x2xf32>
    %cst_26 = arith.constant dense<0.000000e+00> : vector<32xf32>
    %40 = vector.multi_reduction <add>, %37, %cst_26 [1] : vector<32x2xf32> to vector<32xf32>
    %41 = vector.shape_cast %40 : vector<32xf32> to vector<32x1xf32>
    %cst_27 = arith.constant 2.000000e+00 : f32
    %42 = vector.broadcast %cst_27 : f32 to vector<32x1xf32>
    %43 = arith.divf %41, %42 : vector<32x1xf32>
    %44 = vector.broadcast %43 : vector<32x1xf32> to vector<32x2xf32>
    %45 = arith.subf %37, %44 : vector<32x2xf32>
    %46 = arith.mulf %45, %45 : vector<32x2xf32>
    %cst_28 = arith.constant dense<0.000000e+00> : vector<32xf32>
    %47 = vector.multi_reduction <add>, %46, %cst_28 [1] : vector<32x2xf32> to vector<32xf32>
    %48 = vector.shape_cast %47 : vector<32xf32> to vector<32x1xf32>
    %cst_29 = arith.constant 2.000000e+00 : f32
    %49 = vector.broadcast %cst_29 : f32 to vector<32x1xf32>
    %50 = arith.divf %48, %49 : vector<32x1xf32>
    %cst_30 = arith.constant 9.99999974E-6 : f32
    %51 = vector.broadcast %cst_30 : f32 to vector<32x1xf32>
    %52 = arith.addf %50, %51 : vector<32x1xf32>
    %53 = math.rsqrt %52 : vector<32x1xf32>
    %54 = vector.broadcast %53 : vector<32x1xf32> to vector<32x2xf32>
    %55 = arith.mulf %45, %54 : vector<32x2xf32>
    %56 = vector.broadcast %38 : vector<1x2xf32> to vector<32x2xf32>
    %57 = arith.mulf %55, %56 : vector<32x2xf32>
    %58 = vector.broadcast %39 : vector<1x2xf32> to vector<32x2xf32>
    %59 = arith.addf %57, %58 : vector<32x2xf32>
    %cst_31 = arith.constant 0.000000e+00 : f32
    %60 = vector.broadcast %cst_31 : f32 to vector<32x2xf32>
    %61 = arith.maximumf %59, %60 : vector<32x2xf32>
    %62 = vector.extract_strided_slice %61 {offsets = [0, 0], sizes = [16, 2], strides = [1, 1]} : vector<32x2xf32> to vector<16x2xf32>
    %cst_32 = arith.constant 0.000000e+00 : f32
    %63 = vector.broadcast %cst_32 : f32 to vector<16x1xf32>
    %64 = vector.extract_strided_slice %62 {offsets = [0, 0], sizes = [16, 1], strides = [1, 1]} : vector<16x2xf32> to vector<16x1xf32>
    %65 = tpu.concatenate %63, %64 in 1 : vector<16x1xf32>, vector<16x1xf32> -> vector<16x2xf32>
    %66 = vector.extract_strided_slice %61 {offsets = [16, 0], sizes = [16, 2], strides = [1, 1]} : vector<32x2xf32> to vector<16x2xf32>
    %cst_33 = arith.constant 0.000000e+00 : f32
    %67 = vector.broadcast %cst_33 : f32 to vector<16x1xf32>
    %68 = vector.extract_strided_slice %66 {offsets = [0, 0], sizes = [16, 1], strides = [1, 1]} : vector<16x2xf32> to vector<16x1xf32>
    %69 = tpu.concatenate %67, %68 in 1 : vector<16x1xf32>, vector<16x1xf32> -> vector<16x2xf32>
    %70 = tpu.concatenate %65, %69 in 1 : vector<16x2xf32>, vector<16x2xf32> -> vector<16x4xf32>
    %71 = vector.extract_strided_slice %61 {offsets = [0, 0], sizes = [16, 2], strides = [1, 1]} : vector<32x2xf32> to vector<16x2xf32>
    %72 = vector.extract_strided_slice %61 {offsets = [16, 0], sizes = [16, 2], strides = [1, 1]} : vector<32x2xf32> to vector<16x2xf32>
    %73 = tpu.concatenate %71, %72 in 1 : vector<16x2xf32>, vector<16x2xf32> -> vector<16x4xf32>
    %74 = vector.extract_strided_slice %61 {offsets = [0, 0], sizes = [16, 2], strides = [1, 1]} : vector<32x2xf32> to vector<16x2xf32>
    %cst_34 = arith.constant 0.000000e+00 : f32
    %75 = vector.broadcast %cst_34 : f32 to vector<16x1xf32>
    %76 = vector.extract_strided_slice %74 {offsets = [0, 1], sizes = [16, 1], strides = [1, 1]} : vector<16x2xf32> to vector<16x1xf32>
    %77 = tpu.concatenate %76, %75 in 1 : vector<16x1xf32>, vector<16x1xf32> -> vector<16x2xf32>
    %78 = vector.extract_strided_slice %61 {offsets = [16, 0], sizes = [16, 2], strides = [1, 1]} : vector<32x2xf32> to vector<16x2xf32>
    %cst_35 = arith.constant 0.000000e+00 : f32
    %79 = vector.broadcast %cst_35 : f32 to vector<16x1xf32>
    %80 = vector.extract_strided_slice %78 {offsets = [0, 1], sizes = [16, 1], strides = [1, 1]} : vector<16x2xf32> to vector<16x1xf32>
    %81 = tpu.concatenate %80, %79 in 1 : vector<16x1xf32>, vector<16x1xf32> -> vector<16x2xf32>
    %82 = tpu.concatenate %77, %81 in 1 : vector<16x2xf32>, vector<16x2xf32> -> vector<16x4xf32>
    %83 = tpu.concatenate %70, %73, %82 in 0 : vector<16x4xf32>, vector<16x4xf32>, vector<16x4xf32> -> vector<48x4xf32>
    %c0_36 = arith.constant 0 : index
    %c0_37 = arith.constant 0 : index
    %84 = vector.load %arg7[%c0_36, %c0_37] : memref<16x49xf32, #tpu.memory_space<vmem>>, vector<16x48xf32>
    %cst_38 = arith.constant dense<0.000000e+00> : vector<16x4xf32>
    %85 = tpu.matmul %84, %83, %cst_38 {dimension_numbers = #tpu.dot_dimension_numbers<[1], [0], [0], [1], [0, 0, 1, 1], [], []>} : vector<16x48xf32>, vector<48x4xf32>, vector<16x4xf32> -> vector<16x4xf32>
    %c0_39 = arith.constant 0 : index
    %c48 = arith.constant 48 : index
    %86 = vector.load %arg7[%c0_39, %c48] : memref<16x49xf32, #tpu.memory_space<vmem>>, vector<16x1xf32>
    %87 = vector.broadcast %86 : vector<16x1xf32> to vector<16x4xf32>
    %88 = arith.addf %85, %87 : vector<16x4xf32>
    %c0_40 = arith.constant 0 : index
    %c0_41 = arith.constant 0 : index
    %89 = vector.load %arg8[%c0_40, %c0_41] : memref<6x8xf32, #tpu.memory_space<vmem>>, vector<2x8xf32>
    %c4_42 = arith.constant 4 : index
    %c0_43 = arith.constant 0 : index
    %90 = vector.load %arg8[%c4_42, %c0_43] : memref<6x8xf32, #tpu.memory_space<vmem>>, vector<1x8xf32>
    %91 = vector.extract_strided_slice %88 {offsets = [0, 0], sizes = [16, 2], strides = [1, 1]} : vector<16x4xf32> to vector<16x2xf32>
    %cst_44 = arith.constant dense<0.000000e+00> : vector<16x8xf32>
    %92 = tpu.matmul %91, %89, %cst_44 {dimension_numbers = #tpu.dot_dimension_numbers<[1], [0], [0], [1], [0, 0, 1, 1], [], []>} : vector<16x2xf32>, vector<2x8xf32>, vector<16x8xf32> -> vector<16x8xf32>
    %93 = vector.broadcast %90 : vector<1x8xf32> to vector<16x8xf32>
    %94 = arith.addf %92, %93 : vector<16x8xf32>
    %95 = vector.extract_strided_slice %88 {offsets = [0, 2], sizes = [16, 2], strides = [1, 1]} : vector<16x4xf32> to vector<16x2xf32>
    %cst_45 = arith.constant dense<0.000000e+00> : vector<16x8xf32>
    %96 = tpu.matmul %95, %89, %cst_45 {dimension_numbers = #tpu.dot_dimension_numbers<[1], [0], [0], [1], [0, 0, 1, 1], [], []>} : vector<16x2xf32>, vector<2x8xf32>, vector<16x8xf32> -> vector<16x8xf32>
    %97 = vector.broadcast %90 : vector<1x8xf32> to vector<16x8xf32>
    %98 = arith.addf %96, %97 : vector<16x8xf32>
    %99 = tpu.concatenate %94, %98 in 1 : vector<16x8xf32>, vector<16x8xf32> -> vector<16x16xf32>
    %c0_46 = arith.constant 0 : index
    %c0_47 = arith.constant 0 : index
    %100 = vector.load %arg4[%c0_46, %c0_47] : memref<18x17xf32, #tpu.memory_space<vmem>>, vector<9x16xf32>
    %c0_48 = arith.constant 0 : index
    %c16 = arith.constant 16 : index
    %101 = vector.load %arg4[%c0_48, %c16] : memref<18x17xf32, #tpu.memory_space<vmem>>, vector<9x1xf32>
    %c9 = arith.constant 9 : index
    %c0_49 = arith.constant 0 : index
    %102 = vector.load %arg4[%c9, %c0_49] : memref<18x17xf32, #tpu.memory_space<vmem>>, vector<9x16xf32>
    %c9_50 = arith.constant 9 : index
    %c16_51 = arith.constant 16 : index
    %103 = vector.load %arg4[%c9_50, %c16_51] : memref<18x17xf32, #tpu.memory_space<vmem>>, vector<9x1xf32>
    %cst_52 = arith.constant dense<0.000000e+00> : vector<9x16xf32>
    %104 = tpu.matmul %102, %99, %cst_52 {dimension_numbers = #tpu.dot_dimension_numbers<[1], [0], [0], [1], [0, 0, 1, 1], [], []>} : vector<9x16xf32>, vector<16x16xf32>, vector<9x16xf32> -> vector<9x16xf32>
    %105 = vector.broadcast %103 : vector<9x1xf32> to vector<9x16xf32>
    %106 = arith.addf %104, %105 : vector<9x16xf32>
    %cst_53 = arith.constant dense<0.000000e+00> : vector<9x16xf32>
    %107 = tpu.matmul %100, %2, %cst_53 {dimension_numbers = #tpu.dot_dimension_numbers<[1], [0], [0], [1], [0, 0, 1, 1], [], []>} : vector<9x16xf32>, vector<16x16xf32>, vector<9x16xf32> -> vector<9x16xf32>
    %108 = vector.broadcast %101 : vector<9x1xf32> to vector<9x16xf32>
    %109 = arith.addf %107, %108 : vector<9x16xf32>
    %cst_54 = arith.constant 3.000000e-01 : f32
    %110 = vector.broadcast %cst_54 : f32 to vector<9x16xf32>
    %111 = arith.mulf %110, %109 : vector<9x16xf32>
    %cst_55 = arith.constant 0.699999988 : f32
    %112 = vector.broadcast %cst_55 : f32 to vector<9x16xf32>
    %113 = arith.mulf %112, %106 : vector<9x16xf32>
    %114 = arith.addf %111, %113 : vector<9x16xf32>
    %115 = vector.broadcast %1 : vector<1x16xf32> to vector<9x16xf32>
    %116 = arith.mulf %114, %115 : vector<9x16xf32>
    %117 = vector.broadcast %0 : vector<1x16xf32> to vector<9x16xf32>
    %118 = arith.addf %116, %117 : vector<9x16xf32>
    %c0_56 = arith.constant 0 : index
    %c0_57 = arith.constant 0 : index
    %119 = vector.load %arg3[%c0_56, %c0_57] : memref<18x16xf32, #tpu.memory_space<vmem>>, vector<18x16xf32>
    %c0_58 = arith.constant 0 : index
    %c0_59 = arith.constant 0 : index
    %120 = vector.load %arg9[%c0_58, %c0_59] : memref<17x2xf32, #tpu.memory_space<vmem>>, vector<16x2xf32>
    %cst_60 = arith.constant dense<0.000000e+00> : vector<18x2xf32>
    %121 = tpu.matmul %119, %120, %cst_60 {dimension_numbers = #tpu.dot_dimension_numbers<[1], [0], [0], [1], [0, 0, 1, 1], [], []>} : vector<18x16xf32>, vector<16x2xf32>, vector<18x2xf32> -> vector<18x2xf32>
    %c16_61 = arith.constant 16 : index
    %c0_62 = arith.constant 0 : index
    %122 = vector.load %arg9[%c16_61, %c0_62] : memref<17x2xf32, #tpu.memory_space<vmem>>, vector<1x2xf32>
    %123 = vector.broadcast %122 : vector<1x2xf32> to vector<18x2xf32>
    %124 = arith.addf %121, %123 : vector<18x2xf32>
    %cst_63 = arith.constant 0.000000e+00 : f32
    %125 = vector.broadcast %cst_63 : f32 to vector<18x2xf32>
    %126 = arith.maximumf %124, %125 : vector<18x2xf32>
    %c2 = arith.constant 2 : index
    %c0_64 = arith.constant 0 : index
    %127 = vector.load %arg8[%c2, %c0_64] : memref<6x8xf32, #tpu.memory_space<vmem>>, vector<2x8xf32>
    %cst_65 = arith.constant dense<0.000000e+00> : vector<18x8xf32>
    %128 = tpu.matmul %126, %127, %cst_65 {dimension_numbers = #tpu.dot_dimension_numbers<[1], [0], [0], [1], [0, 0, 1, 1], [], []>} : vector<18x2xf32>, vector<2x8xf32>, vector<18x8xf32> -> vector<18x8xf32>
    %c5_66 = arith.constant 5 : index
    %c0_67 = arith.constant 0 : index
    %129 = vector.load %arg8[%c5_66, %c0_67] : memref<6x8xf32, #tpu.memory_space<vmem>>, vector<1x8xf32>
    %130 = vector.broadcast %129 : vector<1x8xf32> to vector<18x8xf32>
    %131 = arith.addf %128, %130 : vector<18x8xf32>
    %132 = vector.extract_strided_slice %131 {offsets = [0, 0], sizes = [9, 8], strides = [1, 1]} : vector<18x8xf32> to vector<9x8xf32>
    %133 = vector.extract_strided_slice %131 {offsets = [9, 0], sizes = [9, 8], strides = [1, 1]} : vector<18x8xf32> to vector<9x8xf32>
    %134 = tpu.concatenate %132, %133 in 1 : vector<9x8xf32>, vector<9x8xf32> -> vector<9x16xf32>
    %135 = arith.addf %118, %134 : vector<9x16xf32>
    %cst_68 = arith.constant 3.000000e-01 : f32
    %136 = vector.broadcast %cst_68 : f32 to vector<9x16xf32>
    %137 = arith.mulf %136, %135 : vector<9x16xf32>
    %cst_69 = arith.constant 0.699999988 : f32
    %138 = vector.broadcast %cst_69 : f32 to vector<9x16xf32>
    %139 = arith.mulf %138, %106 : vector<9x16xf32>
    %140 = arith.addf %137, %139 : vector<9x16xf32>
    %141 = vector.broadcast %1 : vector<1x16xf32> to vector<9x16xf32>
    %142 = arith.mulf %140, %141 : vector<9x16xf32>
    %143 = vector.broadcast %0 : vector<1x16xf32> to vector<9x16xf32>
    %144 = arith.addf %142, %143 : vector<9x16xf32>
    %c0_70 = arith.constant 0 : index
    %c0_71 = arith.constant 0 : index
    %145 = vector.load %arg10[%c0_70, %c0_71] : memref<9x16xf32, #tpu.memory_space<vmem>>, vector<9x16xf32>
    tpu.vector_store %arg10[%c0_70, %c0_71], %144 {strides = array<i32>} : memref<9x16xf32, #tpu.memory_space<vmem>>, vector<9x16xf32>,
    return
  }
}

</mosaic_0001>

<llo_original>
// kernel: timelinear_forward.1
$region0: #{timelinear_forward.1}
  #allocation0 [shape = 'u32[]', space=smem, size = 0x4, offset = 0x4, fixed_abs, tag = 'smem constant byte address 0x4 - core index']
  #allocation1 [shape = 'u32[144,128]{1,0:T(1,128)}', space=vmem, size = 0x12000, scoped, tag = 'internal scratch']
  %s0 = inlined_call_operand.vmem [shape: f32[16,16], index: 0, kind: input, shape index: {}]
  %s1 = inlined_call_operand.vmem [shape: f32[2,16], index: 1, kind: input, shape index: {}]
  %s2 = inlined_call_operand.vmem [shape: f32[32,4], index: 2, kind: input, shape index: {}]
  %s3 = inlined_call_operand.vmem [shape: f32[18,16], index: 3, kind: input, shape index: {}]
  %s4 = inlined_call_operand.vmem [shape: f32[18,17], index: 4, kind: input, shape index: {}]
  %s5 = inlined_call_operand.vmem [shape: f32[7,4], index: 5, kind: input, shape index: {}]
  %s6 = inlined_call_operand.vmem [shape: f32[7,2], index: 6, kind: input, shape index: {}]
  %s7 = inlined_call_operand.vmem [shape: f32[16,49], index: 7, kind: input, shape index: {}]
  %s8 = inlined_call_operand.vmem [shape: f32[6,8], index: 8, kind: input, shape index: {}]
  %s9 = inlined_call_operand.vmem [shape: f32[17,2], index: 9, kind: input, shape index: {}]
  %s10 = inlined_call_operand.vmem [shape: f32[9,16], index: 10, kind: output, shape index: {}]
  %s11 = sld [smem:[#allocation0]]
  $region50: #{timelinear_forward.1} parent=0
    _
  %s13 = ssub.s32 1, %s11
  %s14 = scalar_select 0, %s13, %s11
  // Predicated region
  $region2: #{timelinear_forward.1} parent=0 // pred_check
    _
  $region3: #{timelinear_forward.1} parent=0 // pred_check_branch
    %16 = sbr.rel (0) target = $region5
  $region4: #{timelinear_forward.1} parent=0 // pred_region
    _
  $region5: #{timelinear_forward.1} parent=0 // pred_fallthru
    _
  // Predicated region
  $region6: #{timelinear_forward.1} parent=0 // pred_check
    _
  $region7: #{timelinear_forward.1} parent=0 // pred_check_branch
    %18 = sbr.rel (0) target = $region9
  $region8: #{timelinear_forward.1} parent=0 // pred_region
    _
  $region9: #{timelinear_forward.1} parent=0 // pred_fallthru
    _
  // Predicated region
  $region10: #{timelinear_forward.1} parent=0 // pred_check
    _
  $region11: #{timelinear_forward.1} parent=0 // pred_check_branch
    %20 = sbr.rel (0) target = $region13
  $region12: #{timelinear_forward.1} parent=0 // pred_region
    _
  $region13: #{timelinear_forward.1} parent=0 // pred_fallthru
    _
  // Predicated region
  $region14: #{timelinear_forward.1} parent=0 // pred_check
    _
  $region15: #{timelinear_forward.1} parent=0 // pred_check_branch
    %22 = sbr.rel (0) target = $region17
  $region16: #{timelinear_forward.1} parent=0 // pred_region
    _
  $region17: #{timelinear_forward.1} parent=0 // pred_fallthru
    _
  // Predicated region
  $region18: #{timelinear_forward.1} parent=0 // pred_check
    _
  $region19: #{timelinear_forward.1} parent=0 // pred_check_branch
    %24 = sbr.rel (0) target = $region21
  $region20: #{timelinear_forward.1} parent=0 // pred_region
    _
  $region21: #{timelinear_forward.1} parent=0 // pred_fallthru
    _
  // Predicated region
  $region22: #{timelinear_forward.1} parent=0 // pred_check
    _
  $region23: #{timelinear_forward.1} parent=0 // pred_check_branch
    %26 = sbr.rel (0) target = $region25
  $region24: #{timelinear_forward.1} parent=0 // pred_region
    _
  $region25: #{timelinear_forward.1} parent=0 // pred_fallthru
    _
  // Predicated region
  $region26: #{timelinear_forward.1} parent=0 // pred_check
    _
  $region27: #{timelinear_forward.1} parent=0 // pred_check_branch
    %28 = sbr.rel (0) target = $region29
  $region28: #{timelinear_forward.1} parent=0 // pred_region
    _
  $region29: #{timelinear_forward.1} parent=0 // pred_fallthru
    _
  // Predicated region
  $region30: #{timelinear_forward.1} parent=0 // pred_check
    _
  $region31: #{timelinear_forward.1} parent=0 // pred_check_branch
    %30 = sbr.rel (0) target = $region33
  $region32: #{timelinear_forward.1} parent=0 // pred_region
    _
  $region33: #{timelinear_forward.1} parent=0 // pred_fallthru
    _
  // Predicated region
  $region34: #{timelinear_forward.1} parent=0 // pred_check
    _
  $region35: #{timelinear_forward.1} parent=0 // pred_check_branch
    %32 = sbr.rel (0) target = $region37
  $region36: #{timelinear_forward.1} parent=0 // pred_region
    _
  $region37: #{timelinear_forward.1} parent=0 // pred_fallthru
    _
  // Predicated region
  $region38: #{timelinear_forward.1} parent=0 // pred_check
    _
  $region39: #{timelinear_forward.1} parent=0 // pred_check_branch
    %34 = sbr.rel (0) target = $region41
  $region40: #{timelinear_forward.1} parent=0 // pred_region
    _
  $region41: #{timelinear_forward.1} parent=0 // pred_fallthru
    _
  %v35 = vld [vmem:[%s1] sm:$0x1]
  %v36 = vld [vmem:[%s1 + $0x1] sm:$0x1]
  %v37 = vld [vmem:[%s0] sm:$0xff]
  %v38 = vld [vmem:[%s0 + $0x8] sm:$0xff]
  %v39 = vld [vmem:[%s2] sm:$0xff]
  %v40 = vld [vmem:[%s2 + $0x8] sm:$0xff]
  %v41 = vld [vmem:[%s2 + $0x10] sm:$0xff]
  %v42 = vld [vmem:[%s2 + $0x18] sm:$0xff]
  %v43 = vld [vmem:[%s5] sm:$0xf]
  %v44 = vld [vmem:[%s5 + $0x4] sm:$0x1]
  %v45 = vlaneseq
  %v46 = vshrl.u32 %v45, 7
  %v47 = vsub.s32 0, %v46
  %v48 = vrot.slane %v44, %v47
  %vm49 = vcmask 31744
  %v51 = vsel %vm49, %v39, 0
  %v54 = vsel %vm49, %v40, 0
  %v57 = vsel %vm49, %v41, 0
  %v60 = vsel %vm49, %v42, 0
  %vm62 = vcmask 1043456
  %v64 = vsel %vm62, %v43, 0
  %66 = vmatprep.subr.mxu0 0.0
  %67 = vmatpush1.msra.mxu0 %v64
  %68 = vmatprep.subr.mxu0 0.0
  %69 = vmatpush1.msra.mxu0 0.0
  %70 = vmatprep.subr.mxu0 0.0
  %71 = vmatpush1.msra.mxu0 0.0
  %72 = vmatprep.subr.mxu0 0.0
  %73 = vmatpush1.msra.mxu0 0.0
  %74 = vmatprep.subr.mxu0 0.0
  %75 = vmatpush1.msra.mxu0 0.0
  %76 = vmatprep.subr.mxu0 0.0
  %77 = vmatpush1.msra.mxu0 0.0
  %78 = vmatprep.subr.mxu0 0.0
  %79 = vmatpush1.msra.mxu0 0.0
  %80 = vmatprep.subr.mxu0 0.0
  %81 = vmatpush1.msra.mxu0 0.0
  %82 = vmatprep.subr.mxu0 0.0
  %83 = vmatpush1.msra.mxu0 0.0
  %84 = vmatprep.subr.mxu0 0.0
  %85 = vmatpush1.msra.mxu0 0.0
  %86 = vmatprep.subr.mxu0 0.0
  %87 = vmatpush1.msra.mxu0 0.0
  %88 = vmatprep.subr.mxu0 0.0
  %89 = vmatpush1.msra.mxu0 0.0
  %90 = vmatprep.subr.mxu0 0.0
  %91 = vmatpush1.msra.mxu0 0.0
  %92 = vmatprep.subr.mxu0 0.0
  %93 = vmatpush1.msra.mxu0 0.0
  %94 = vmatprep.subr.mxu0 0.0
  %95 = vmatpush1.msra.mxu0 0.0
  %96 = vmatprep.subr.mxu0 0.0
  %97 = vmatpush1.msra.mxu0 0.0
  %98 = vmatprep.subr.mxu0 0.0
  %99 = vmatpush1.msra.mxu0 0.0
  %100 = vmatprep.subr.mxu0 0.0
  %101 = vmatpush1.msra.mxu0 0.0
  %102 = vmatprep.subr.mxu0 0.0
  %103 = vmatpush1.msra.mxu0 0.0
  %104 = vmatprep.subr.mxu0 0.0
  %105 = vmatpush1.msra.mxu0 0.0
  %106 = vmatprep.subr.mxu0 0.0
  %107 = vmatpush1.msra.mxu0 0.0
  %108 = vmatprep.subr.mxu0 0.0
  %109 = vmatpush1.msra.mxu0 0.0
  %110 = vmatprep.subr.mxu0 0.0
  %111 = vmatpush1.msra.mxu0 0.0
  %112 = vmatprep.subr.mxu0 0.0
  %113 = vmatpush1.msra.mxu0 0.0
  %114 = vmatprep.subr.mxu0 0.0
  %115 = vmatpush1.msra.mxu0 0.0
  %116 = vmatprep.subr.mxu0 0.0
  %117 = vmatpush1.msra.mxu0 0.0
  %118 = vmatprep.subr.mxu0 0.0
  %119 = vmatpush1.msra.mxu0 0.0
  %120 = vmatprep.subr.mxu0 0.0
  %121 = vmatpush1.msra.mxu0 0.0
  %122 = vmatprep.subr.mxu0 0.0
  %123 = vmatpush1.msra.mxu0 0.0
  %124 = vmatprep.subr.mxu0 0.0
  %125 = vmatpush1.msra.mxu0 0.0
  %126 = vmatprep.subr.mxu0 0.0
  %127 = vmatpush1.msra.mxu0 0.0
  %128 = vmatprep.subr.mxu0 0.0
  %129 = vmatpush1.msra.mxu0 0.0
  %130 = vmatprep.mubr.f32.mxu0 0.0
  %131 = vmatmul.mubr.f32.gmra.mrb[0].mxu0 %v51
  %v132 = vpop.f32.mrb[0].mxu0
  %v133 = vadd.f32 %v48, %v132
  %v134 = vpop.f32.mrb[0].mxu0
  %135 = vmatprep.mubr.f32.mxu0 0.0
  %136 = vmatmul.mubr.f32.gmra.mrb[0].mxu0 %v54
  %v137 = vpop.f32.mrb[0].mxu0
  %v138 = vadd.f32 %v48, %v137
  %v139 = vpop.f32.mrb[0].mxu0
  %140 = vmatprep.mubr.f32.mxu0 0.0
  %141 = vmatmul.mubr.f32.gmra.mrb[0].mxu0 %v57
  %v142 = vpop.f32.mrb[0].mxu0
  %v143 = vadd.f32 %v48, %v142
  %v144 = vpop.f32.mrb[0].mxu0
  %145 = vmatprep.mubr.f32.mxu0 0.0
  %146 = vmatmul.mubr.f32.gmra.mrb[0].mxu0 %v60
  %v147 = vpop.f32.mrb[0].mxu0
  %v148 = vadd.f32 %v48, %v147
  %v149 = vpop.f32.mrb[0].mxu0
  %150 = vdwg.mxu0
  %v151 = vld [vmem:[%s5 + $0x5] sm:$0x1]
  %v152 = vld [vmem:[%s5 + $0x6] sm:$0x1]
  %v153 = vsel %vm49, %v133, 0.0
  %154 = vadd.xlane.f32.xlu0 %v153
  %v155 = vpop.xlane.xlu0 %154
  %v156 = vsel %vm49, %v138, 0.0
  %157 = vadd.xlane.f32.xlu0 %v156
  %v158 = vpop.xlane.xlu0 %157
  %v159 = vsel %vm49, %v143, 0.0
  %160 = vadd.xlane.f32.xlu0 %v159
  %v161 = vpop.xlane.xlu0 %160
  %v162 = vsel %vm49, %v148, 0.0
  %163 = vadd.xlane.f32.xlu0 %v162
  %v164 = vpop.xlane.xlu0 %163
  %v165 = vrcp.pop 4.0
  %v166 = vmul.f32 %v155, %v165
  %v167 = vmul.f32 %v158, %v165
  %v168 = vmul.f32 %v161, %v165
  %v169 = vmul.f32 %v164, %v165
  %v170 = vsub.f32 %v133, %v166
  %v171 = vsub.f32 %v138, %v167
  %v172 = vsub.f32 %v143, %v168
  %v173 = vsub.f32 %v148, %v169
  %v174 = vmul.f32 %v170, %v170
  %v175 = vmul.f32 %v171, %v171
  %v176 = vmul.f32 %v172, %v172
  %v177 = vmul.f32 %v173, %v173
  %v178 = vsel %vm49, %v174, 0.0
  %179 = vadd.xlane.f32.xlu0 %v178
  %v180 = vpop.xlane.xlu0 %179
  %v181 = vsel %vm49, %v175, 0.0
  %182 = vadd.xlane.f32.xlu0 %v181
  %v183 = vpop.xlane.xlu0 %182
  %v184 = vsel %vm49, %v176, 0.0
  %185 = vadd.xlane.f32.xlu0 %v184
  %v186 = vpop.xlane.xlu0 %185
  %v187 = vsel %vm49, %v177, 0.0
  %188 = vadd.xlane.f32.xlu0 %v187
  %v189 = vpop.xlane.xlu0 %188
  %v190 = vmul.f32 %v180, %v165
  %v191 = vmul.f32 %v183, %v165
  %v192 = vmul.f32 %v186, %v165
  %v193 = vmul.f32 %v189, %v165
  %v194 = vadd.f32 %v190, 1e-05
  %v195 = vadd.f32 %v191, 1e-05
  %v196 = vadd.f32 %v192, 1e-05
  %v197 = vadd.f32 %v193, 1e-05
  %v198 = vrsqrt.pop %v194
  %v199 = vrsqrt.pop %v195
  %v200 = vrsqrt.pop %v196
  %v201 = vrsqrt.pop %v197
  %v202 = vmul.f32 %v170, %v198
  %v203 = vmul.f32 %v171, %v199
  %v204 = vmul.f32 %v172, %v200
  %v205 = vmul.f32 %v173, %v201
  %v206 = vlaneseq
  %v207 = vshrl.u32 %v206, 7
  %v208 = vsub.s32 0, %v207
  %v209 = vrot.slane %v151, %v208
  %v210 = vmul.f32 %v202, %v209
  %v211 = vmul.f32 %v203, %v209
  %v212 = vmul.f32 %v204, %v209
  %v213 = vmul.f32 %v205, %v209
  %v214 = vlaneseq
  %v215 = vshrl.u32 %v214, 7
  %v216 = vsub.s32 0, %v215
  %v217 = vrot.slane %v152, %v216
  %v218 = vadd.f32 %v210, %v217
  %v219 = vadd.f32 %v211, %v217
  %v220 = vadd.f32 %v212, %v217
  %v221 = vadd.f32 %v213, %v217
  %v222 = vmax.f32 %v218, 0.0
  %v223 = vmax.f32 %v219, 0.0
  %v224 = vmax.f32 %v220, 0.0
  %v225 = vmax.f32 %v221, 0.0
  %v226 = vld [vmem:[%s6] sm:$0xf]
  %v227 = vld [vmem:[%s6 + $0x4] sm:$0x1]
  %v228 = vlaneseq
  %v229 = vshrl.u32 %v228, 7
  %v230 = vsub.s32 0, %v229
  %v231 = vrot.slane %v227, %v230
  %v233 = vsel %vm49, %v222, 0
  %v236 = vsel %vm49, %v223, 0
  %v239 = vsel %vm49, %v224, 0
  %v242 = vsel %vm49, %v225, 0
  %v245 = vsel %vm62, %v226, 0
  %247 = vmatprep.subr.mxu0 0.0
  %248 = vmatpush1.msra.mxu0 %v245
  %249 = vmatprep.subr.mxu0 0.0
  %250 = vmatpush1.msra.mxu0 0.0
  %251 = vmatprep.subr.mxu0 0.0
  %252 = vmatpush1.msra.mxu0 0.0
  %253 = vmatprep.subr.mxu0 0.0
  %254 = vmatpush1.msra.mxu0 0.0
  %255 = vmatprep.subr.mxu0 0.0
  %256 = vmatpush1.msra.mxu0 0.0
  %257 = vmatprep.subr.mxu0 0.0
  %258 = vmatpush1.msra.mxu0 0.0
  %259 = vmatprep.subr.mxu0 0.0
  %260 = vmatpush1.msra.mxu0 0.0
  %261 = vmatprep.subr.mxu0 0.0
  %262 = vmatpush1.msra.mxu0 0.0
  %263 = vmatprep.subr.mxu0 0.0
  %264 = vmatpush1.msra.mxu0 0.0
  %265 = vmatprep.subr.mxu0 0.0
  %266 = vmatpush1.msra.mxu0 0.0
  %267 = vmatprep.subr.mxu0 0.0
  %268 = vmatpush1.msra.mxu0 0.0
  %269 = vmatprep.subr.mxu0 0.0
  %270 = vmatpush1.msra.mxu0 0.0
  %271 = vmatprep.subr.mxu0 0.0
  %272 = vmatpush1.msra.mxu0 0.0
  %273 = vmatprep.subr.mxu0 0.0
  %274 = vmatpush1.msra.mxu0 0.0
  %275 = vmatprep.subr.mxu0 0.0
  %276 = vmatpush1.msra.mxu0 0.0
  %277 = vmatprep.subr.mxu0 0.0
  %278 = vmatpush1.msra.mxu0 0.0
  %279 = vmatprep.subr.mxu0 0.0
  %280 = vmatpush1.msra.mxu0 0.0
  %281 = vmatprep.subr.mxu0 0.0
  %282 = vmatpush1.msra.mxu0 0.0
  %283 = vmatprep.subr.mxu0 0.0
  %284 = vmatpush1.msra.mxu0 0.0
  %285 = vmatprep.subr.mxu0 0.0
  %286 = vmatpush1.msra.mxu0 0.0
  %287 = vmatprep.subr.mxu0 0.0
  %288 = vmatpush1.msra.mxu0 0.0
  %289 = vmatprep.subr.mxu0 0.0
  %290 = vmatpush1.msra.mxu0 0.0
  %291 = vmatprep.subr.mxu0 0.0
  %292 = vmatpush1.msra.mxu0 0.0
  %293 = vmatprep.subr.mxu0 0.0
  %294 = vmatpush1.msra.mxu0 0.0
  %295 = vmatprep.subr.mxu0 0.0
  %296 = vmatpush1.msra.mxu0 0.0
  %297 = vmatprep.subr.mxu0 0.0
  %298 = vmatpush1.msra.mxu0 0.0
  %299 = vmatprep.subr.mxu0 0.0
  %300 = vmatpush1.msra.mxu0 0.0
  %301 = vmatprep.subr.mxu0 0.0
  %302 = vmatpush1.msra.mxu0 0.0
  %303 = vmatprep.subr.mxu0 0.0
  %304 = vmatpush1.msra.mxu0 0.0
  %305 = vmatprep.subr.mxu0 0.0
  %306 = vmatpush1.msra.mxu0 0.0
  %307 = vmatprep.subr.mxu0 0.0
  %308 = vmatpush1.msra.mxu0 0.0
  %309 = vmatprep.subr.mxu0 0.0
  %310 = vmatpush1.msra.mxu0 0.0
  %311 = vmatprep.mubr.f32.mxu0 0.0
  %312 = vmatmul.mubr.f32.gmra.mrb[0].mxu0 %v233
  %v313 = vpop.f32.mrb[0].mxu0
  %v314 = vadd.f32 %v231, %v313
  %v315 = vpop.f32.mrb[0].mxu0
  %316 = vmatprep.mubr.f32.mxu0 0.0
  %317 = vmatmul.mubr.f32.gmra.mrb[0].mxu0 %v236
  %v318 = vpop.f32.mrb[0].mxu0
  %v319 = vadd.f32 %v231, %v318
  %v320 = vpop.f32.mrb[0].mxu0
  %321 = vmatprep.mubr.f32.mxu0 0.0
  %322 = vmatmul.mubr.f32.gmra.mrb[0].mxu0 %v239
  %v323 = vpop.f32.mrb[0].mxu0
  %v324 = vadd.f32 %v231, %v323
  %v325 = vpop.f32.mrb[0].mxu0
  %326 = vmatprep.mubr.f32.mxu0 0.0
  %327 = vmatmul.mubr.f32.gmra.mrb[0].mxu0 %v242
  %v328 = vpop.f32.mrb[0].mxu0
  %v329 = vadd.f32 %v231, %v328
  %v330 = vpop.f32.mrb[0].mxu0
  %331 = vdwg.mxu0
  %v332 = vld [vmem:[%s6 + $0x5] sm:$0x1]
  %v333 = vld [vmem:[%s6 + $0x6] sm:$0x1]
  %vm334 = vcmask 15360
  %v335 = vsel %vm334, %v314, 0.0
  %336 = vadd.xlane.f32.xlu0 %v335
  %v337 = vpop.xlane.xlu0 %336
  %v338 = vsel %vm334, %v319, 0.0
  %339 = vadd.xlane.f32.xlu0 %v338
  %v340 = vpop.xlane.xlu0 %339
  %v341 = vsel %vm334, %v324, 0.0
  %342 = vadd.xlane.f32.xlu0 %v341
  %v343 = vpop.xlane.xlu0 %342
  %v344 = vsel %vm334, %v329, 0.0
  %345 = vadd.xlane.f32.xlu0 %v344
  %v346 = vpop.xlane.xlu0 %345
  %v347 = vrcp.pop 2.0
  %v348 = vmul.f32 %v337, %v347
  %v349 = vmul.f32 %v340, %v347
  %v350 = vmul.f32 %v343, %v347
  %v351 = vmul.f32 %v346, %v347
  %v352 = vsub.f32 %v314, %v348
  %v353 = vsub.f32 %v319, %v349
  %v354 = vsub.f32 %v324, %v350
  %v355 = vsub.f32 %v329, %v351
  %v356 = vmul.f32 %v352, %v352
  %v357 = vmul.f32 %v353, %v353
  %v358 = vmul.f32 %v354, %v354
  %v359 = vmul.f32 %v355, %v355
  %v360 = vsel %vm334, %v356, 0.0
  %361 = vadd.xlane.f32.xlu0 %v360
  %v362 = vpop.xlane.xlu0 %361
  %v363 = vsel %vm334, %v357, 0.0
  %364 = vadd.xlane.f32.xlu0 %v363
  %v365 = vpop.xlane.xlu0 %364
  %v366 = vsel %vm334, %v358, 0.0
  %367 = vadd.xlane.f32.xlu0 %v366
  %v368 = vpop.xlane.xlu0 %367
  %v369 = vsel %vm334, %v359, 0.0
  %370 = vadd.xlane.f32.xlu0 %v369
  %v371 = vpop.xlane.xlu0 %370
  %v372 = vmul.f32 %v362, %v347
  %v373 = vmul.f32 %v365, %v347
  %v374 = vmul.f32 %v368, %v347
  %v375 = vmul.f32 %v371, %v347
  %v376 = vadd.f32 %v372, 1e-05
  %v377 = vadd.f32 %v373, 1e-05
  %v378 = vadd.f32 %v374, 1e-05
  %v379 = vadd.f32 %v375, 1e-05
  %v380 = vrsqrt.pop %v376
  %v381 = vrsqrt.pop %v377
  %v382 = vrsqrt.pop %v378
  %v383 = vrsqrt.pop %v379
  %v384 = vmul.f32 %v352, %v380
  %v385 = vmul.f32 %v353, %v381
  %v386 = vmul.f32 %v354, %v382
  %v387 = vmul.f32 %v355, %v383
  %v388 = vlaneseq
  %v389 = vshrl.u32 %v388, 7
  %v390 = vsub.s32 0, %v389
  %v391 = vrot.slane %v332, %v390
  %v392 = vmul.f32 %v384, %v391
  %v393 = vmul.f32 %v385, %v391
  %v394 = vmul.f32 %v386, %v391
  %v395 = vmul.f32 %v387, %v391
  %v396 = vlaneseq
  %v397 = vshrl.u32 %v396, 7
  %v398 = vsub.s32 0, %v397
  %v399 = vrot.slane %v333, %v398
  %v400 = vadd.f32 %v392, %v399
  %v401 = vadd.f32 %v393, %v399
  %v402 = vadd.f32 %v394, %v399
  %v403 = vadd.f32 %v395, %v399
  %v404 = vmax.f32 %v400, 0.0
  %v405 = vmax.f32 %v401, 0.0
  %v406 = vmax.f32 %v402, 0.0
  %v407 = vmax.f32 %v403, 0.0
  %410 = vrot.lane.b32.xlu0 %v404, 1
  %v411 = vpop.permute.xlu0 %410
  %412 = vrot.lane.b32.xlu0 %v405, 1
  %v413 = vpop.permute.xlu0 %412
  %vm416 = vcmask 7168
  %v417 = vsel %vm416, 0.0, %v411
  %v418 = vsel %vm416, 0.0, %v413
  %421 = vrot.lane.b32.xlu0 %v406, 1
  %v422 = vpop.permute.xlu0 %421
  %423 = vrot.lane.b32.xlu0 %v407, 1
  %v424 = vpop.permute.xlu0 %423
  %v427 = vsel %vm416, 0.0, %v422
  %v428 = vsel %vm416, 0.0, %v424
  %431 = vrot.lane.b32.xlu0 %v427, 2
  %v432 = vpop.permute.xlu0 %431
  %433 = vrot.lane.b32.xlu0 %v428, 2
  %v434 = vpop.permute.xlu0 %433
  %v437 = vsel %vm334, %v417, %v432
  %v438 = vsel %vm334, %v418, %v434
  %439 = vrot.lane.b32.xlu0 %v406, 2
  %v440 = vpop.permute.xlu0 %439
  %441 = vrot.lane.b32.xlu0 %v407, 2
  %v442 = vpop.permute.xlu0 %441
  %v445 = vsel %vm334, %v404, %v440
  %v446 = vsel %vm334, %v405, %v442
  %447 = vrot.lane.b32.xlu0 %v404, 127
  %v448 = vpop.permute.xlu0 %447
  %449 = vrot.lane.b32.xlu0 %v405, 127
  %v450 = vpop.permute.xlu0 %449
  %v453 = vsel %vm416, %v448, 0.0
  %v454 = vsel %vm416, %v450, 0.0
  %455 = vrot.lane.b32.xlu0 %v406, 127
  %v456 = vpop.permute.xlu0 %455
  %457 = vrot.lane.b32.xlu0 %v407, 127
  %v458 = vpop.permute.xlu0 %457
  %v461 = vsel %vm416, %v456, 0.0
  %v462 = vsel %vm416, %v458, 0.0
  %465 = vrot.lane.b32.xlu0 %v461, 2
  %v466 = vpop.permute.xlu0 %465
  %467 = vrot.lane.b32.xlu0 %v462, 2
  %v468 = vpop.permute.xlu0 %467
  %v471 = vsel %vm334, %v453, %v466
  %v472 = vsel %vm334, %v454, %v468
  %v473 = vld [vmem:[%s7] sm:$0xff]
  %v474 = vld [vmem:[%s7 + $0x8] sm:$0xff]
  %476 = vset.pattern.permute.xlu0 48
  %477 = vperm.xlu0 %476, %v473
  %v478 = vpop.permute.xlu0 %477
  %481 = vset.pattern.permute.xlu0 48
  %482 = vperm.xlu0 %481, %v474
  %v483 = vpop.permute.xlu0 %482
  %vm485 = vcmask 392192
  %v486 = vsel %vm485, %v473, 0
  %v488 = vsel %vm485, %v474, 0
  %490 = vmatprep.subr.mxu0 0.0
  %491 = vmatpush1.msra.mxu0 %v437
  %492 = vmatprep.subr.mxu0 0.0
  %493 = vmatpush1.msra.mxu0 %v438
  %494 = vmatprep.subr.mxu0 0.0
  %495 = vmatpush1.msra.mxu0 %v445
  %496 = vmatprep.subr.mxu0 0.0
  %497 = vmatpush1.msra.mxu0 %v446
  %498 = vmatprep.subr.mxu0 0.0
  %499 = vmatpush1.msra.mxu0 %v471
  %500 = vmatprep.subr.mxu0 0.0
  %501 = vmatpush1.msra.mxu0 %v472
  %502 = vmatprep.subr.mxu0 0.0
  %503 = vmatpush1.msra.mxu0 0.0
  %504 = vmatprep.subr.mxu0 0.0
  %505 = vmatpush1.msra.mxu0 0.0
  %506 = vmatprep.subr.mxu0 0.0
  %507 = vmatpush1.msra.mxu0 0.0
  %508 = vmatprep.subr.mxu0 0.0
  %509 = vmatpush1.msra.mxu0 0.0
  %510 = vmatprep.subr.mxu0 0.0
  %511 = vmatpush1.msra.mxu0 0.0
  %512 = vmatprep.subr.mxu0 0.0
  %513 = vmatpush1.msra.mxu0 0.0
  %514 = vmatprep.subr.mxu0 0.0
  %515 = vmatpush1.msra.mxu0 0.0
  %516 = vmatprep.subr.mxu0 0.0
  %517 = vmatpush1.msra.mxu0 0.0
  %518 = vmatprep.subr.mxu0 0.0
  %519 = vmatpush1.msra.mxu0 0.0
  %520 = vmatprep.subr.mxu0 0.0
  %521 = vmatpush1.msra.mxu0 0.0
  %522 = vmatprep.subr.mxu0 0.0
  %523 = vmatpush1.msra.mxu0 0.0
  %524 = vmatprep.subr.mxu0 0.0
  %525 = vmatpush1.msra.mxu0 0.0
  %526 = vmatprep.subr.mxu0 0.0
  %527 = vmatpush1.msra.mxu0 0.0
  %528 = vmatprep.subr.mxu0 0.0
  %529 = vmatpush1.msra.mxu0 0.0
  %530 = vmatprep.subr.mxu0 0.0
  %531 = vmatpush1.msra.mxu0 0.0
  %532 = vmatprep.subr.mxu0 0.0
  %533 = vmatpush1.msra.mxu0 0.0
  %534 = vmatprep.subr.mxu0 0.0
  %535 = vmatpush1.msra.mxu0 0.0
  %536 = vmatprep.subr.mxu0 0.0
  %537 = vmatpush1.msra.mxu0 0.0
  %538 = vmatprep.subr.mxu0 0.0
  %539 = vmatpush1.msra.mxu0 0.0
  %540 = vmatprep.subr.mxu0 0.0
  %541 = vmatpush1.msra.mxu0 0.0
  %542 = vmatprep.subr.mxu0 0.0
  %543 = vmatpush1.msra.mxu0 0.0
  %544 = vmatprep.subr.mxu0 0.0
  %545 = vmatpush1.msra.mxu0 0.0
  %546 = vmatprep.subr.mxu0 0.0
  %547 = vmatpush1.msra.mxu0 0.0
  %548 = vmatprep.subr.mxu0 0.0
  %549 = vmatpush1.msra.mxu0 0.0
  %550 = vmatprep.subr.mxu0 0.0
  %551 = vmatpush1.msra.mxu0 0.0
  %552 = vmatprep.subr.mxu0 0.0
  %553 = vmatpush1.msra.mxu0 0.0
  %554 = vmatprep.mubr.f32.mxu0 0.0
  %555 = vmatmul.mubr.f32.gmra.mrb[0].mxu0 %v486
  %v556 = vpop.f32.mrb[0].mxu0
  %v557 = vadd.f32 %v478, %v556
  %v558 = vpop.f32.mrb[0].mxu0
  %559 = vmatprep.mubr.f32.mxu0 0.0
  %560 = vmatmul.mubr.f32.gmra.mrb[0].mxu0 %v488
  %v561 = vpop.f32.mrb[0].mxu0
  %v562 = vadd.f32 %v483, %v561
  %v563 = vpop.f32.mrb[0].mxu0
  %564 = vdwg.mxu0
  %v565 = vld [vmem:[%s8] sm:$0x3]
  %v566 = vld [vmem:[%s8 + $0x4] sm:$0x1]
  %v567 = vlaneseq
  %v568 = vshrl.u32 %v567, 7
  %v569 = vsub.s32 0, %v568
  %v570 = vrot.slane %v566, %v569
  %v572 = vsel %vm334, %v557, 0
  %v575 = vsel %vm334, %v562, 0
  %vm577 = vcmask 1041408
  %v579 = vsel %vm577, %v565, 0
  %581 = vmatprep.subr.mxu0 0.0
  %582 = vmatpush1.msra.mxu0 %v579
  %583 = vmatprep.subr.mxu0 0.0
  %584 = vmatpush1.msra.mxu0 0.0
  %585 = vmatprep.subr.mxu0 0.0
  %586 = vmatpush1.msra.mxu0 0.0
  %587 = vmatprep.subr.mxu0 0.0
  %588 = vmatpush1.msra.mxu0 0.0
  %589 = vmatprep.subr.mxu0 0.0
  %590 = vmatpush1.msra.mxu0 0.0
  %591 = vmatprep.subr.mxu0 0.0
  %592 = vmatpush1.msra.mxu0 0.0
  %593 = vmatprep.subr.mxu0 0.0
  %594 = vmatpush1.msra.mxu0 0.0
  %595 = vmatprep.subr.mxu0 0.0
  %596 = vmatpush1.msra.mxu0 0.0
  %597 = vmatprep.subr.mxu0 0.0
  %598 = vmatpush1.msra.mxu0 0.0
  %599 = vmatprep.subr.mxu0 0.0
  %600 = vmatpush1.msra.mxu0 0.0
  %601 = vmatprep.subr.mxu0 0.0
  %602 = vmatpush1.msra.mxu0 0.0
  %603 = vmatprep.subr.mxu0 0.0
  %604 = vmatpush1.msra.mxu0 0.0
  %605 = vmatprep.subr.mxu0 0.0
  %606 = vmatpush1.msra.mxu0 0.0
  %607 = vmatprep.subr.mxu0 0.0
  %608 = vmatpush1.msra.mxu0 0.0
  %609 = vmatprep.subr.mxu0 0.0
  %610 = vmatpush1.msra.mxu0 0.0
  %611 = vmatprep.subr.mxu0 0.0
  %612 = vmatpush1.msra.mxu0 0.0
  %613 = vmatprep.subr.mxu0 0.0
  %614 = vmatpush1.msra.mxu0 0.0
  %615 = vmatprep.subr.mxu0 0.0
  %616 = vmatpush1.msra.mxu0 0.0
  %617 = vmatprep.subr.mxu0 0.0
  %618 = vmatpush1.msra.mxu0 0.0
  %619 = vmatprep.subr.mxu0 0.0
  %620 = vmatpush1.msra.mxu0 0.0
  %621 = vmatprep.subr.mxu0 0.0
  %622 = vmatpush1.msra.mxu0 0.0
  %623 = vmatprep.subr.mxu0 0.0
  %624 = vmatpush1.msra.mxu0 0.0
  %625 = vmatprep.subr.mxu0 0.0
  %626 = vmatpush1.msra.mxu0 0.0
  %627 = vmatprep.subr.mxu0 0.0
  %628 = vmatpush1.msra.mxu0 0.0
  %629 = vmatprep.subr.mxu0 0.0
  %630 = vmatpush1.msra.mxu0 0.0
  %631 = vmatprep.subr.mxu0 0.0
  %632 = vmatpush1.msra.mxu0 0.0
  %633 = vmatprep.subr.mxu0 0.0
  %634 = vmatpush1.msra.mxu0 0.0
  %635 = vmatprep.subr.mxu0 0.0
  %636 = vmatpush1.msra.mxu0 0.0
  %637 = vmatprep.subr.mxu0 0.0
  %638 = vmatpush1.msra.mxu0 0.0
  %639 = vmatprep.subr.mxu0 0.0
  %640 = vmatpush1.msra.mxu0 0.0
  %641 = vmatprep.subr.mxu0 0.0
  %642 = vmatpush1.msra.mxu0 0.0
  %643 = vmatprep.subr.mxu0 0.0
  %644 = vmatpush1.msra.mxu0 0.0
  %645 = vmatprep.mubr.f32.mxu0 0.0
  %646 = vmatmul.mubr.f32.gmra.mrb[0].mxu0 %v572
  %v647 = vpop.f32.mrb[0].mxu0
  %v648 = vadd.f32 %v570, %v647
  %v649 = vpop.f32.mrb[0].mxu0
  %650 = vmatprep.mubr.f32.mxu0 0.0
  %651 = vmatmul.mubr.f32.gmra.mrb[0].mxu0 %v575
  %v652 = vpop.f32.mrb[0].mxu0
  %v653 = vadd.f32 %v570, %v652
  %v654 = vpop.f32.mrb[0].mxu0
  %655 = vdwg.mxu0
  %656 = vrot.lane.b32.xlu0 %v557, 126
  %v657 = vpop.permute.xlu0 %656
  %658 = vrot.lane.b32.xlu0 %v562, 126
  %v659 = vpop.permute.xlu0 %658
  %v660 = vsel %vm334, %v657, 0
  %v662 = vsel %vm334, %v659, 0
  %664 = vmatprep.subr.mxu0 0.0
  %665 = vmatpush1.msra.mxu0 %v579
  %666 = vmatprep.subr.mxu0 0.0
  %667 = vmatpush1.msra.mxu0 0.0
  %668 = vmatprep.subr.mxu0 0.0
  %669 = vmatpush1.msra.mxu0 0.0
  %670 = vmatprep.subr.mxu0 0.0
  %671 = vmatpush1.msra.mxu0 0.0
  %672 = vmatprep.subr.mxu0 0.0
  %673 = vmatpush1.msra.mxu0 0.0
  %674 = vmatprep.subr.mxu0 0.0
  %675 = vmatpush1.msra.mxu0 0.0
  %676 = vmatprep.subr.mxu0 0.0
  %677 = vmatpush1.msra.mxu0 0.0
  %678 = vmatprep.subr.mxu0 0.0
  %679 = vmatpush1.msra.mxu0 0.0
  %680 = vmatprep.subr.mxu0 0.0
  %681 = vmatpush1.msra.mxu0 0.0
  %682 = vmatprep.subr.mxu0 0.0
  %683 = vmatpush1.msra.mxu0 0.0
  %684 = vmatprep.subr.mxu0 0.0
  %685 = vmatpush1.msra.mxu0 0.0
  %686 = vmatprep.subr.mxu0 0.0
  %687 = vmatpush1.msra.mxu0 0.0
  %688 = vmatprep.subr.mxu0 0.0
  %689 = vmatpush1.msra.mxu0 0.0
  %690 = vmatprep.subr.mxu0 0.0
  %691 = vmatpush1.msra.mxu0 0.0
  %692 = vmatprep.subr.mxu0 0.0
  %693 = vmatpush1.msra.mxu0 0.0
  %694 = vmatprep.subr.mxu0 0.0
  %695 = vmatpush1.msra.mxu0 0.0
  %696 = vmatprep.subr.mxu0 0.0
  %697 = vmatpush1.msra.mxu0 0.0
  %698 = vmatprep.subr.mxu0 0.0
  %699 = vmatpush1.msra.mxu0 0.0
  %700 = vmatprep.subr.mxu0 0.0
  %701 = vmatpush1.msra.mxu0 0.0
  %702 = vmatprep.subr.mxu0 0.0
  %703 = vmatpush1.msra.mxu0 0.0
  %704 = vmatprep.subr.mxu0 0.0
  %705 = vmatpush1.msra.mxu0 0.0
  %706 = vmatprep.subr.mxu0 0.0
  %707 = vmatpush1.msra.mxu0 0.0
  %708 = vmatprep.subr.mxu0 0.0
  %709 = vmatpush1.msra.mxu0 0.0
  %710 = vmatprep.subr.mxu0 0.0
  %711 = vmatpush1.msra.mxu0 0.0
  %712 = vmatprep.subr.mxu0 0.0
  %713 = vmatpush1.msra.mxu0 0.0
  %714 = vmatprep.subr.mxu0 0.0
  %715 = vmatpush1.msra.mxu0 0.0
  %716 = vmatprep.subr.mxu0 0.0
  %717 = vmatpush1.msra.mxu0 0.0
  %718 = vmatprep.subr.mxu0 0.0
  %719 = vmatpush1.msra.mxu0 0.0
  %720 = vmatprep.subr.mxu0 0.0
  %721 = vmatpush1.msra.mxu0 0.0
  %722 = vmatprep.subr.mxu0 0.0
  %723 = vmatpush1.msra.mxu0 0.0
  %724 = vmatprep.subr.mxu0 0.0
  %725 = vmatpush1.msra.mxu0 0.0
  %726 = vmatprep.subr.mxu0 0.0
  %727 = vmatpush1.msra.mxu0 0.0
  %728 = vmatprep.mubr.f32.mxu0 0.0
  %729 = vmatmul.mubr.f32.gmra.mrb[0].mxu0 %v660
  %v730 = vpop.f32.mrb[0].mxu0
  %v731 = vadd.f32 %v570, %v730
  %v732 = vpop.f32.mrb[0].mxu0
  %733 = vmatprep.mubr.f32.mxu0 0.0
  %734 = vmatmul.mubr.f32.gmra.mrb[0].mxu0 %v662
  %v735 = vpop.f32.mrb[0].mxu0
  %v736 = vadd.f32 %v570, %v735
  %v737 = vpop.f32.mrb[0].mxu0
  %738 = vdwg.mxu0
  %741 = vrot.lane.b32.xlu0 %v731, 8
  %v742 = vpop.permute.xlu0 %741
  %743 = vrot.lane.b32.xlu0 %v736, 8
  %v744 = vpop.permute.xlu0 %743
  %vm747 = vcmask 64512
  %v748 = vsel %vm747, %v648, %v742
  %v749 = vsel %vm747, %v653, %v744
  %v750 = vld [vmem:[%s4] sm:$0xff]
  %v751 = vld [vmem:[%s4 + $0x8] sm:$0x1]
  %v752 = vld [vmem:[%s4 + $0x9] sm:$0xff]
  %v753 = vld [vmem:[%s4 + $0x11] sm:$0x1]
  %755 = vset.pattern.permute.xlu0 16
  %756 = vperm.xlu0 %755, %v752
  %v757 = vpop.permute.xlu0 %756
  %760 = vset.pattern.permute.xlu0 16
  %761 = vperm.xlu0 %760, %v753
  %v762 = vpop.permute.xlu0 %761
  %vm764 = vcmask 130048
  %v765 = vsel %vm764, %v752, 0
  %v767 = vsel %vm764, %v753, 0
  %769 = vmatprep.subr.mxu0 0.0
  %770 = vmatpush1.msra.mxu0 %v748
  %771 = vmatprep.subr.mxu0 0.0
  %772 = vmatpush1.msra.mxu0 %v749
  %773 = vmatprep.subr.mxu0 0.0
  %774 = vmatpush1.msra.mxu0 0.0
  %775 = vmatprep.subr.mxu0 0.0
  %776 = vmatpush1.msra.mxu0 0.0
  %777 = vmatprep.subr.mxu0 0.0
  %778 = vmatpush1.msra.mxu0 0.0
  %779 = vmatprep.subr.mxu0 0.0
  %780 = vmatpush1.msra.mxu0 0.0
  %781 = vmatprep.subr.mxu0 0.0
  %782 = vmatpush1.msra.mxu0 0.0
  %783 = vmatprep.subr.mxu0 0.0
  %784 = vmatpush1.msra.mxu0 0.0
  %785 = vmatprep.subr.mxu0 0.0
  %786 = vmatpush1.msra.mxu0 0.0
  %787 = vmatprep.subr.mxu0 0.0
  %788 = vmatpush1.msra.mxu0 0.0
  %789 = vmatprep.subr.mxu0 0.0
  %790 = vmatpush1.msra.mxu0 0.0
  %791 = vmatprep.subr.mxu0 0.0
  %792 = vmatpush1.msra.mxu0 0.0
  %793 = vmatprep.subr.mxu0 0.0
  %794 = vmatpush1.msra.mxu0 0.0
  %795 = vmatprep.subr.mxu0 0.0
  %796 = vmatpush1.msra.mxu0 0.0
  %797 = vmatprep.subr.mxu0 0.0
  %798 = vmatpush1.msra.mxu0 0.0
  %799 = vmatprep.subr.mxu0 0.0
  %800 = vmatpush1.msra.mxu0 0.0
  %801 = vmatprep.subr.mxu0 0.0
  %802 = vmatpush1.msra.mxu0 0.0
  %803 = vmatprep.subr.mxu0 0.0
  %804 = vmatpush1.msra.mxu0 0.0
  %805 = vmatprep.subr.mxu0 0.0
  %806 = vmatpush1.msra.mxu0 0.0
  %807 = vmatprep.subr.mxu0 0.0
  %808 = vmatpush1.msra.mxu0 0.0
  %809 = vmatprep.subr.mxu0 0.0
  %810 = vmatpush1.msra.mxu0 0.0
  %811 = vmatprep.subr.mxu0 0.0
  %812 = vmatpush1.msra.mxu0 0.0
  %813 = vmatprep.subr.mxu0 0.0
  %814 = vmatpush1.msra.mxu0 0.0
  %815 = vmatprep.subr.mxu0 0.0
  %816 = vmatpush1.msra.mxu0 0.0
  %817 = vmatprep.subr.mxu0 0.0
  %818 = vmatpush1.msra.mxu0 0.0
  %819 = vmatprep.subr.mxu0 0.0
  %820 = vmatpush1.msra.mxu0 0.0
  %821 = vmatprep.subr.mxu0 0.0
  %822 = vmatpush1.msra.mxu0 0.0
  %823 = vmatprep.subr.mxu0 0.0
  %824 = vmatpush1.msra.mxu0 0.0
  %825 = vmatprep.subr.mxu0 0.0
  %826 = vmatpush1.msra.mxu0 0.0
  %827 = vmatprep.subr.mxu0 0.0
  %828 = vmatpush1.msra.mxu0 0.0
  %829 = vmatprep.subr.mxu0 0.0
  %830 = vmatpush1.msra.mxu0 0.0
  %831 = vmatprep.subr.mxu0 0.0
  %832 = vmatpush1.msra.mxu0 0.0
  %833 = vmatprep.mubr.f32.mxu0 0.0
  %834 = vmatmul.mubr.f32.gmra.mrb[0].mxu0 %v765
  %v835 = vpop.f32.mrb[0].mxu0
  %v836 = vadd.f32 %v757, %v835
  %v837 = vpop.f32.mrb[0].mxu0
  %838 = vmatprep.mubr.f32.mxu0 0.0
  %839 = vmatmul.mubr.f32.gmra.mrb[0].mxu0 %v767
  %v840 = vpop.f32.mrb[0].mxu0
  %v841 = vadd.f32 %v762, %v840
  %v842 = vpop.f32.mrb[0].mxu0
  %843 = vdwg.mxu0
  %845 = vset.pattern.permute.xlu0 16
  %846 = vperm.xlu0 %845, %v750
  %v847 = vpop.permute.xlu0 %846
  %850 = vset.pattern.permute.xlu0 16
  %851 = vperm.xlu0 %850, %v751
  %v852 = vpop.permute.xlu0 %851
  %v854 = vsel %vm764, %v750, 0
  %v856 = vsel %vm764, %v751, 0
  %858 = vmatprep.subr.mxu0 0.0
  %859 = vmatpush1.msra.mxu0 %v37
  %860 = vmatprep.subr.mxu0 0.0
  %861 = vmatpush1.msra.mxu0 %v38
  %862 = vmatprep.subr.mxu0 0.0
  %863 = vmatpush1.msra.mxu0 0.0
  %864 = vmatprep.subr.mxu0 0.0
  %865 = vmatpush1.msra.mxu0 0.0
  %866 = vmatprep.subr.mxu0 0.0
  %867 = vmatpush1.msra.mxu0 0.0
  %868 = vmatprep.subr.mxu0 0.0
  %869 = vmatpush1.msra.mxu0 0.0
  %870 = vmatprep.subr.mxu0 0.0
  %871 = vmatpush1.msra.mxu0 0.0
  %872 = vmatprep.subr.mxu0 0.0
  %873 = vmatpush1.msra.mxu0 0.0
  %874 = vmatprep.subr.mxu0 0.0
  %875 = vmatpush1.msra.mxu0 0.0
  %876 = vmatprep.subr.mxu0 0.0
  %877 = vmatpush1.msra.mxu0 0.0
  %878 = vmatprep.subr.mxu0 0.0
  %879 = vmatpush1.msra.mxu0 0.0
  %880 = vmatprep.subr.mxu0 0.0
  %881 = vmatpush1.msra.mxu0 0.0
  %882 = vmatprep.subr.mxu0 0.0
  %883 = vmatpush1.msra.mxu0 0.0
  %884 = vmatprep.subr.mxu0 0.0
  %885 = vmatpush1.msra.mxu0 0.0
  %886 = vmatprep.subr.mxu0 0.0
  %887 = vmatpush1.msra.mxu0 0.0
  %888 = vmatprep.subr.mxu0 0.0
  %889 = vmatpush1.msra.mxu0 0.0
  %890 = vmatprep.subr.mxu0 0.0
  %891 = vmatpush1.msra.mxu0 0.0
  %892 = vmatprep.subr.mxu0 0.0
  %893 = vmatpush1.msra.mxu0 0.0
  %894 = vmatprep.subr.mxu0 0.0
  %895 = vmatpush1.msra.mxu0 0.0
  %896 = vmatprep.subr.mxu0 0.0
  %897 = vmatpush1.msra.mxu0 0.0
  %898 = vmatprep.subr.mxu0 0.0
  %899 = vmatpush1.msra.mxu0 0.0
  %900 = vmatprep.subr.mxu0 0.0
  %901 = vmatpush1.msra.mxu0 0.0
  %902 = vmatprep.subr.mxu0 0.0
  %903 = vmatpush1.msra.mxu0 0.0
  %904 = vmatprep.subr.mxu0 0.0
  %905 = vmatpush1.msra.mxu0 0.0
  %906 = vmatprep.subr.mxu0 0.0
  %907 = vmatpush1.msra.mxu0 0.0
  %908 = vmatprep.subr.mxu0 0.0
  %909 = vmatpush1.msra.mxu0 0.0
  %910 = vmatprep.subr.mxu0 0.0
  %911 = vmatpush1.msra.mxu0 0.0
  %912 = vmatprep.subr.mxu0 0.0
  %913 = vmatpush1.msra.mxu0 0.0
  %914 = vmatprep.subr.mxu0 0.0
  %915 = vmatpush1.msra.mxu0 0.0
  %916 = vmatprep.subr.mxu0 0.0
  %917 = vmatpush1.msra.mxu0 0.0
  %918 = vmatprep.subr.mxu0 0.0
  %919 = vmatpush1.msra.mxu0 0.0
  %920 = vmatprep.subr.mxu0 0.0
  %921 = vmatpush1.msra.mxu0 0.0
  %922 = vmatprep.mubr.f32.mxu0 0.0
  %923 = vmatmul.mubr.f32.gmra.mrb[0].mxu0 %v854
  %v924 = vpop.f32.mrb[0].mxu0
  %v925 = vadd.f32 %v847, %v924
  %v926 = vpop.f32.mrb[0].mxu0
  %927 = vmatprep.mubr.f32.mxu0 0.0
  %928 = vmatmul.mubr.f32.gmra.mrb[0].mxu0 %v856
  %v929 = vpop.f32.mrb[0].mxu0
  %v930 = vadd.f32 %v852, %v929
  %v931 = vpop.f32.mrb[0].mxu0
  %932 = vdwg.mxu0
  %v933 = vmul.f32 %v925, 0.3
  %v934 = vmul.f32 %v930, 0.3
  %v935 = vmul.f32 %v836, 0.7
  %v936 = vmul.f32 %v841, 0.7
  %v937 = vadd.f32 %v933, %v935
  %v938 = vadd.f32 %v934, %v936
  %v939 = vlaneseq
  %v940 = vshrl.u32 %v939, 7
  %v941 = vsub.s32 0, %v940
  %v942 = vrot.slane %v36, %v941
  %v943 = vmul.f32 %v937, %v942
  %v944 = vmul.f32 %v938, %v942
  %v945 = vlaneseq
  %v946 = vshrl.u32 %v945, 7
  %v947 = vsub.s32 0, %v946
  %v948 = vrot.slane %v35, %v947
  %v949 = vadd.f32 %v943, %v948
  %v950 = vadd.f32 %v944, %v948
  %v951 = vld [vmem:[%s3] sm:$0xff]
  %v952 = vld [vmem:[%s3 + $0x8] sm:$0xff]
  %v953 = vld [vmem:[%s3 + $0x10] sm:$0x3]
  %v954 = vld [vmem:[%s9] sm:$0xff]
  %v955 = vld [vmem:[%s9 + $0x8] sm:$0xff]
  %v956 = vld [vmem:[%s9 + $0x10] sm:$0x1]
  %v957 = vlaneseq
  %v958 = vshrl.u32 %v957, 7
  %v959 = vsub.s32 0, %v958
  %v960 = vrot.slane %v956, %v959
  %v962 = vsel %vm764, %v951, 0
  %v965 = vsel %vm764, %v952, 0
  %v968 = vsel %vm764, %v953, 0
  %970 = vmatprep.subr.mxu0 0.0
  %971 = vmatpush1.msra.mxu0 %v954
  %972 = vmatprep.subr.mxu0 0.0
  %973 = vmatpush1.msra.mxu0 %v955
  %974 = vmatprep.subr.mxu0 0.0
  %975 = vmatpush1.msra.mxu0 0.0
  %976 = vmatprep.subr.mxu0 0.0
  %977 = vmatpush1.msra.mxu0 0.0
  %978 = vmatprep.subr.mxu0 0.0
  %979 = vmatpush1.msra.mxu0 0.0
  %980 = vmatprep.subr.mxu0 0.0
  %981 = vmatpush1.msra.mxu0 0.0
  %982 = vmatprep.subr.mxu0 0.0
  %983 = vmatpush1.msra.mxu0 0.0
  %984 = vmatprep.subr.mxu0 0.0
  %985 = vmatpush1.msra.mxu0 0.0
  %986 = vmatprep.subr.mxu0 0.0
  %987 = vmatpush1.msra.mxu0 0.0
  %988 = vmatprep.subr.mxu0 0.0
  %989 = vmatpush1.msra.mxu0 0.0
  %990 = vmatprep.subr.mxu0 0.0
  %991 = vmatpush1.msra.mxu0 0.0
  %992 = vmatprep.subr.mxu0 0.0
  %993 = vmatpush1.msra.mxu0 0.0
  %994 = vmatprep.subr.mxu0 0.0
  %995 = vmatpush1.msra.mxu0 0.0
  %996 = vmatprep.subr.mxu0 0.0
  %997 = vmatpush1.msra.mxu0 0.0
  %998 = vmatprep.subr.mxu0 0.0
  %999 = vmatpush1.msra.mxu0 0.0
  %1000 = vmatprep.subr.mxu0 0.0
  %1001 = vmatpush1.msra.mxu0 0.0
  %1002 = vmatprep.subr.mxu0 0.0
  %1003 = vmatpush1.msra.mxu0 0.0
  %1004 = vmatprep.subr.mxu0 0.0
  %1005 = vmatpush1.msra.mxu0 0.0
  %1006 = vmatprep.subr.mxu0 0.0
  %1007 = vmatpush1.msra.mxu0 0.0
  %1008 = vmatprep.subr.mxu0 0.0
  %1009 = vmatpush1.msra.mxu0 0.0
  %1010 = vmatprep.subr.mxu0 0.0
  %1011 = vmatpush1.msra.mxu0 0.0
  %1012 = vmatprep.subr.mxu0 0.0
  %1013 = vmatpush1.msra.mxu0 0.0
  %1014 = vmatprep.subr.mxu0 0.0
  %1015 = vmatpush1.msra.mxu0 0.0
  %1016 = vmatprep.subr.mxu0 0.0
  %1017 = vmatpush1.msra.mxu0 0.0
  %1018 = vmatprep.subr.mxu0 0.0
  %1019 = vmatpush1.msra.mxu0 0.0
  %1020 = vmatprep.subr.mxu0 0.0
  %1021 = vmatpush1.msra.mxu0 0.0
  %1022 = vmatprep.subr.mxu0 0.0
  %1023 = vmatpush1.msra.mxu0 0.0
  %1024 = vmatprep.subr.mxu0 0.0
  %1025 = vmatpush1.msra.mxu0 0.0
  %1026 = vmatprep.subr.mxu0 0.0
  %1027 = vmatpush1.msra.mxu0 0.0
  %1028 = vmatprep.subr.mxu0 0.0
  %1029 = vmatpush1.msra.mxu0 0.0
  %1030 = vmatprep.subr.mxu0 0.0
  %1031 = vmatpush1.msra.mxu0 0.0
  %1032 = vmatprep.subr.mxu0 0.0
  %1033 = vmatpush1.msra.mxu0 0.0
  %1034 = vmatprep.mubr.f32.mxu0 0.0
  %1035 = vmatmul.mubr.f32.gmra.mrb[0].mxu0 %v962
  %v1036 = vpop.f32.mrb[0].mxu0
  %v1037 = vadd.f32 %v960, %v1036
  %v1038 = vpop.f32.mrb[0].mxu0
  %1039 = vmatprep.mubr.f32.mxu0 0.0
  %1040 = vmatmul.mubr.f32.gmra.mrb[0].mxu0 %v965
  %v1041 = vpop.f32.mrb[0].mxu0
  %v1042 = vadd.f32 %v960, %v1041
  %v1043 = vpop.f32.mrb[0].mxu0
  %1044 = vmatprep.mubr.f32.mxu0 0.0
  %1045 = vmatmul.mubr.f32.gmra.mrb[0].mxu0 %v968
  %v1046 = vpop.f32.mrb[0].mxu0
  %v1047 = vadd.f32 %v960, %v1046
  %v1048 = vpop.f32.mrb[0].mxu0
  %1049 = vdwg.mxu0
  %v1050 = vmax.f32 %v1037, 0.0
  %v1051 = vmax.f32 %v1042, 0.0
  %v1052 = vmax.f32 %v1047, 0.0
  %v1053 = vld [vmem:[%s8 + $0x2] sm:$0x3]
  %v1054 = vld [vmem:[%s8 + $0x5] sm:$0x1]
  %v1055 = vlaneseq
  %v1056 = vshrl.u32 %v1055, 7
  %v1057 = vsub.s32 0, %v1056
  %v1058 = vrot.slane %v1054, %v1057
  %v1060 = vsel %vm334, %v1050, 0
  %v1063 = vsel %vm334, %v1051, 0
  %v1066 = vsel %vm334, %v1052, 0
  %v1069 = vsel %vm577, %v1053, 0
  %1071 = vmatprep.subr.mxu0 0.0
  %1072 = vmatpush1.msra.mxu0 %v1069
  %1073 = vmatprep.subr.mxu0 0.0
  %1074 = vmatpush1.msra.mxu0 0.0
  %1075 = vmatprep.subr.mxu0 0.0
  %1076 = vmatpush1.msra.mxu0 0.0
  %1077 = vmatprep.subr.mxu0 0.0
  %1078 = vmatpush1.msra.mxu0 0.0
  %1079 = vmatprep.subr.mxu0 0.0
  %1080 = vmatpush1.msra.mxu0 0.0
  %1081 = vmatprep.subr.mxu0 0.0
  %1082 = vmatpush1.msra.mxu0 0.0
  %1083 = vmatprep.subr.mxu0 0.0
  %1084 = vmatpush1.msra.mxu0 0.0
  %1085 = vmatprep.subr.mxu0 0.0
  %1086 = vmatpush1.msra.mxu0 0.0
  %1087 = vmatprep.subr.mxu0 0.0
  %1088 = vmatpush1.msra.mxu0 0.0
  %1089 = vmatprep.subr.mxu0 0.0
  %1090 = vmatpush1.msra.mxu0 0.0
  %1091 = vmatprep.subr.mxu0 0.0
  %1092 = vmatpush1.msra.mxu0 0.0
  %1093 = vmatprep.subr.mxu0 0.0
  %1094 = vmatpush1.msra.mxu0 0.0
  %1095 = vmatprep.subr.mxu0 0.0
  %1096 = vmatpush1.msra.mxu0 0.0
  %1097 = vmatprep.subr.mxu0 0.0
  %1098 = vmatpush1.msra.mxu0 0.0
  %1099 = vmatprep.subr.mxu0 0.0
  %1100 = vmatpush1.msra.mxu0 0.0
  %1101 = vmatprep.subr.mxu0 0.0
  %1102 = vmatpush1.msra.mxu0 0.0
  %1103 = vmatprep.subr.mxu0 0.0
  %1104 = vmatpush1.msra.mxu0 0.0
  %1105 = vmatprep.subr.mxu0 0.0
  %1106 = vmatpush1.msra.mxu0 0.0
  %1107 = vmatprep.subr.mxu0 0.0
  %1108 = vmatpush1.msra.mxu0 0.0
  %1109 = vmatprep.subr.mxu0 0.0
  %1110 = vmatpush1.msra.mxu0 0.0
  %1111 = vmatprep.subr.mxu0 0.0
  %1112 = vmatpush1.msra.mxu0 0.0
  %1113 = vmatprep.subr.mxu0 0.0
  %1114 = vmatpush1.msra.mxu0 0.0
  %1115 = vmatprep.subr.mxu0 0.0
  %1116 = vmatpush1.msra.mxu0 0.0
  %1117 = vmatprep.subr.mxu0 0.0
  %1118 = vmatpush1.msra.mxu0 0.0
  %1119 = vmatprep.subr.mxu0 0.0
  %1120 = vmatpush1.msra.mxu0 0.0
  %1121 = vmatprep.subr.mxu0 0.0
  %1122 = vmatpush1.msra.mxu0 0.0
  %1123 = vmatprep.subr.mxu0 0.0
  %1124 = vmatpush1.msra.mxu0 0.0
  %1125 = vmatprep.subr.mxu0 0.0
  %1126 = vmatpush1.msra.mxu0 0.0
  %1127 = vmatprep.subr.mxu0 0.0
  %1128 = vmatpush1.msra.mxu0 0.0
  %1129 = vmatprep.subr.mxu0 0.0
  %1130 = vmatpush1.msra.mxu0 0.0
  %1131 = vmatprep.subr.mxu0 0.0
  %1132 = vmatpush1.msra.mxu0 0.0
  %1133 = vmatprep.subr.mxu0 0.0
  %1134 = vmatpush1.msra.mxu0 0.0
  %1135 = vmatprep.mubr.f32.mxu0 0.0
  %1136 = vmatmul.mubr.f32.gmra.mrb[0].mxu0 %v1060
  %v1137 = vpop.f32.mrb[0].mxu0
  %v1138 = vadd.f32 %v1058, %v1137
  %v1139 = vpop.f32.mrb[0].mxu0
  %1140 = vmatprep.mubr.f32.mxu0 0.0
  %1141 = vmatmul.mubr.f32.gmra.mrb[0].mxu0 %v1063
  %v1142 = vpop.f32.mrb[0].mxu0
  %v1143 = vadd.f32 %v1058, %v1142
  %v1144 = vpop.f32.mrb[0].mxu0
  %1145 = vmatprep.mubr.f32.mxu0 0.0
  %1146 = vmatmul.mubr.f32.gmra.mrb[0].mxu0 %v1066
  %v1147 = vpop.f32.mrb[0].mxu0
  %v1148 = vadd.f32 %v1058, %v1147
  %v1149 = vpop.f32.mrb[0].mxu0
  %1150 = vdwg.mxu0
  %vm1153 = vcmask 1046528
  %v1154 = vrot.slane %v1143, 1
  %v1155 = vrot.slane %v1148, 1
  %v1156 = vsel %vm1153, %v1154, %v1155
  %1157 = vrot.lane.b32.xlu0 %v1156, 8
  %v1158 = vpop.permute.xlu0 %1157
  %1159 = vrot.lane.b32.xlu0 %v1155, 8
  %v1160 = vpop.permute.xlu0 %1159
  %v1163 = vsel %vm747, %v1138, %v1158
  %v1164 = vsel %vm747, %v1143, %v1160
  %v1165 = vadd.f32 %v949, %v1163
  %v1166 = vadd.f32 %v950, %v1164
  %v1167 = vmul.f32 %v1165, 0.3
  %v1168 = vmul.f32 %v1166, 0.3
  %v1169 = vadd.f32 %v1167, %v935
  %v1170 = vadd.f32 %v1168, %v936
  %v1171 = vmul.f32 %v1169, %v942
  %v1172 = vmul.f32 %v1170, %v942
  %v1173 = vadd.f32 %v1171, %v948
  %v1174 = vadd.f32 %v1172, %v948
  %1175 = vst.msk [vmem:[%s10] sm:$0xff] %vm764, %v1173
  %vm1176 = vcmask 122880
  %1177 = vst.msk [vmem:[%s10 + $0x8] sm:$0x1] %vm1176, %v1174
  // Predicated region
  $region42: #{timelinear_forward.1} parent=0 // pred_check
    _
  $region43: #{timelinear_forward.1} parent=0 // pred_check_branch
    %1179 = sbr.rel (0) target = $region45
  $region44: #{timelinear_forward.1} parent=0 // pred_region
    _
  $region45: #{timelinear_forward.1} parent=0 // pred_fallthru
    _
  // Predicated region
  $region46: #{timelinear_forward.1} parent=0 // pred_check
    _
  $region47: #{timelinear_forward.1} parent=0 // pred_check_branch
    %1181 = sbr.rel (0) target = $region49
  $region48: #{timelinear_forward.1} parent=0 // pred_region
    _
  $region49: #{timelinear_forward.1} parent=0 // pred_fallthru
    _

</llo_original>
